<compile_context>
chip_gen: v6e
topology: v6e:2x2x1
jax: 0.10.0
libtpu: 0.0.40
codegen_flags: <defaults>
</compile_context>

<pallas_src>
import functools

import jax
import jax.numpy as jnp
from jax import lax
from jax.experimental import pallas as pl
from jax.experimental.pallas import tpu as pltpu


def _round_up(x, m):
    return (x + m - 1) // m * m


def _pick_row_tile(h1):
    """Largest row tile in {8,4,2,1} dividing H1, preferring >=2 row blocks."""
    divs = [t for t in (8, 4, 2, 1) if h1 % t == 0]
    multi = [t for t in divs if h1 // t >= 2]
    return max(multi) if multi else max(divs)


def _residual_block_kernel(x_ref, w1_ref, b1_ref, w2_ref, b2_ref,
                           ws_ref, bs_ref, out_ref, h1pad_ref,
                           *, stride, has_skip_conv, h1_total, row_tile):
    # x_ref    : (Hx, Wp, Cinp)  f32  — padded input image of current batch item
    # w1_ref   : (3, 3*Cinp, Coutp)  bf16   (kh, kw*Cin, Cout)
    # w2_ref   : (3, 3*Coutp, Coutp) bf16
    # ws_ref   : (Cinp, Coutp) bf16 ; b*_ref : (1, Coutp) f32
    # out_ref  : (row_tile, W1, Coutp) f32  — one output row block
    # h1pad_ref: (row_tile+2, W1+2, Coutp) f32 scratch (conv1 output + halo)
    r = pl.program_id(1)
    hh = row_tile + 2                       # conv1 rows incl. 1-row halo each side
    _, w1_, coutp = out_ref.shape
    cinp = x_ref.shape[-1]
    m2 = hh * w1_
    m = row_tile * w1_

    # ---- conv1: 3x3, stride=`stride`, pad=1 -> bias -> ReLU (halo block) ----
    row0 = pl.multiple_of(r * (row_tile * stride), row_tile * stride)
    acc1 = jnp.zeros((m2, coutp), jnp.float32)
    for kh in range(3):
        taps = [
            x_ref[pl.ds(row0 + kh, hh, stride), pl.ds(kw, w1_, stride), :]
            .reshape(m2, cinp)
            for kw in range(3)
        ]
        patch = jnp.concatenate(taps, axis=1).astype(jnp.bfloat16)
        acc1 += jnp.dot(patch, w1_ref[kh], preferred_element_type=jnp.float32)
    h1 = jnp.maximum(acc1 + b1_ref[...], 0.0).reshape(hh, w1_, coutp)

    # Halo rows that fall outside [0, H1) must act as conv2's zero padding.
    j = lax.broadcasted_iota(jnp.int32, (hh, w1_, coutp), 0) + (r * row_tile - 1)
    h1 = jnp.where((j >= 0) & (j < h1_total), h1, 0.0)

    # Stash into scratch; only the two W-border columns need zeroing.
    h1pad_ref[:, pl.ds(1, w1_), :] = h1
    zero_col = jnp.zeros((hh, 1, coutp), jnp.float32)
    h1pad_ref[:, pl.ds(0, 1), :] = zero_col
    h1pad_ref[:, pl.ds(w1_ + 1, 1), :] = zero_col

    # ---- conv2: 3x3, stride=1, pad=1 -> bias --------------------------------
    acc2 = jnp.zeros((m, coutp), jnp.float32)
    for kh in range(3):
        taps = [
            h1pad_ref[pl.ds(kh, row_tile), pl.ds(kw, w1_), :].reshape(m, coutp)
            for kw in range(3)
        ]
        patch = jnp.concatenate(taps, axis=1).astype(jnp.bfloat16)
        acc2 += jnp.dot(patch, w2_ref[kh], preferred_element_type=jnp.float32)
    conv_path = acc2 + b2_ref[...]

    # ---- skip path ----------------------------------------------------------
    if has_skip_conv:
        # 1x1 conv, stride=2 (hard-coded in the PyTorch module), no padding.
        srow0 = 2 * r * row_tile + 1 + stride
        sp = x_ref[pl.ds(srow0, row_tile, 2), pl.ds(1, w1_, 2), :]
        skip = jnp.dot(sp.reshape(m, cinp).astype(jnp.bfloat16), ws_ref[...],
                       preferred_element_type=jnp.float32) + bs_ref[...]
    else:
        # Identity skip (stride == 1, Cin == Cout).
        srow0 = r * row_tile + 1 + stride
        skip = x_ref[pl.ds(srow0, row_tile), pl.ds(1, w1_), :].reshape(m, cinp)

    out = jnp.maximum(conv_path + skip, 0.0)
    out_ref[...] = out.reshape(row_tile, w1_, coutp).astype(out_ref.dtype)


def residual_block_forward(x_nchw, params, *, stride, has_skip_conv):
    """Pallas forward pass. x_nchw: (N, Cin, H, W) float32, PyTorch layout."""
    N, Cin, H, W = x_nchw.shape
    Cout = params["w1"].shape[0]
    if has_skip_conv:
        # Skip conv stride is hard-coded to 2 in the PyTorch module; shapes only
        # line up when the main path also uses stride 2.
        assert stride == 2, "conv skip path requires stride == 2"
    else:
        assert stride == 1 and Cin == Cout, "identity skip requires stride==1, Cin==Cout"

    H1 = (H + 2 - 3) // stride + 1
    W1 = (W + 2 - 3) // stride + 1
    Cinp = _round_up(Cin, 128)
    Coutp = _round_up(Cout, 128)
    row_tile = _pick_row_tile(H1)
    n_row_blocks = H1 // row_tile

    # NCHW -> NHWC, pad channels to 128-lane density, pad H/W for the 3x3
    # convs. Extra `stride` zero rows on top / a few on the bottom give every
    # row block a uniform, always-in-bounds read window for its conv2 halo.
    extra_top = stride
    extra_bot = max(0, H1 * stride + 2 - (H + 1))
    x = jnp.transpose(x_nchw, (0, 2, 3, 1))
    x = jnp.pad(x, ((0, 0), (1 + extra_top, 1 + extra_bot), (1, 1),
                    (0, Cinp - Cin))).astype(jnp.float32)
    Hx, Wp = x.shape[1], x.shape[2]

    def pad_w(w, cin_p, cout_p):
        return jnp.pad(w, ((0, cout_p - w.shape[0]), (0, cin_p - w.shape[1]),
                           (0, 0), (0, 0)))

    # torch (Cout, Cin, kh, kw) -> (kh, kw*Cin, Cout); bf16 MXU operands.
    w1 = jnp.transpose(pad_w(params["w1"], Cinp, Coutp), (2, 3, 1, 0))
    w1 = w1.reshape(3, 3 * Cinp, Coutp).astype(jnp.bfloat16)
    w2 = jnp.transpose(pad_w(params["w2"], Coutp, Coutp), (2, 3, 1, 0))
    w2 = w2.reshape(3, 3 * Coutp, Coutp).astype(jnp.bfloat16)
    b1 = jnp.pad(params["b1"], (0, Coutp - Cout)).reshape(1, Coutp).astype(jnp.float32)
    b2 = jnp.pad(params["b2"], (0, Coutp - Cout)).reshape(1, Coutp).astype(jnp.float32)
    if has_skip_conv:
        ws = jnp.transpose(pad_w(params["ws"], Cinp, Coutp), (2, 3, 1, 0))[0, 0]
        ws = ws.astype(jnp.bfloat16)
        bs = jnp.pad(params["bs"], (0, Coutp - Cout)).reshape(1, Coutp).astype(jnp.float32)
    else:  # dummies to keep the kernel signature uniform
        ws = jnp.zeros((Cinp, Coutp), jnp.bfloat16)
        bs = jnp.zeros((1, Coutp), jnp.float32)

    kernel = functools.partial(_residual_block_kernel, stride=stride,
                               has_skip_conv=has_skip_conv,
                               h1_total=H1, row_tile=row_tile)

    def full_spec(shape):
        return pl.BlockSpec(shape, lambda b, r: (0,) * len(shape))

    out_nhwc = pl.pallas_call(
        kernel,
        out_shape=jax.ShapeDtypeStruct((N, H1, W1, Coutp), jnp.float32),
        grid=(N, n_row_blocks),
        in_specs=[
            pl.BlockSpec((None, Hx, Wp, Cinp), lambda b, r: (b, 0, 0, 0)),
            full_spec((3, 3 * Cinp, Coutp)),
            full_spec((1, Coutp)),
            full_spec((3, 3 * Coutp, Coutp)),
            full_spec((1, Coutp)),
            full_spec((Cinp, Coutp)),
            full_spec((1, Coutp)),
        ],
        out_specs=pl.BlockSpec((None, row_tile, W1, Coutp),
                               lambda b, r: (b, r, 0, 0)),
        scratch_shapes=[pltpu.VMEM((row_tile + 2, W1 + 2, Coutp), jnp.float32)],
        compiler_params=pltpu.CompilerParams(
            dimension_semantics=("parallel", "parallel"),
            vmem_limit_bytes=32 * 1024 * 1024),
    )(x, w1, b1, w2, b2, ws, bs)

    out = out_nhwc[:, :, :, :Cout]          # drop channel padding
    return jnp.transpose(out, (0, 3, 1, 2))  # -> NCHW


def residual_block_reference(x, params, *, stride, has_skip_conv):
    """Pure-JAX reference (NCHW, f32) mirroring the PyTorch module exactly."""
    dn = ("NCHW", "OIHW", "NCHW")
    h = lax.conv_general_dilated(x, params["w1"], (stride, stride),
                                 ((1, 1), (1, 1)), dimension_numbers=dn)
    h = h + params["b1"][None, :, None, None]
    h = jnp.maximum(h, 0.0)
    h = lax.conv_general_dilated(h, params["w2"], (1, 1),
                                 ((1, 1), (1, 1)), dimension_numbers=dn)
    h = h + params["b2"][None, :, None, None]
    if has_skip_conv:
        s = lax.conv_general_dilated(x, params["ws"], (2, 2),
                                     ((0, 0), (0, 0)), dimension_numbers=dn)
        s = s + params["bs"][None, :, None, None]
    else:
        s = x
    return jnp.maximum(h + s, 0.0)


def make_params(key, in_channels, out_channels, has_skip_conv):
    ks = jax.random.split(key, 6)
    p = {
        "w1": 0.1 * jax.random.normal(ks[0], (out_channels, in_channels, 3, 3), jnp.float32),
        "b1": 0.1 * jax.random.normal(ks[1], (out_channels,), jnp.float32),
        "w2": 0.1 * jax.random.normal(ks[2], (out_channels, out_channels, 3, 3), jnp.float32),
        "b2": 0.1 * jax.random.normal(ks[3], (out_channels,), jnp.float32),
    }
    if has_skip_conv:
        p["ws"] = 0.1 * jax.random.normal(ks[4], (out_channels, in_channels, 1, 1), jnp.float32)
        p["bs"] = 0.1 * jax.random.normal(ks[5], (out_channels,), jnp.float32)
    return p


if __name__ == "__main__":
    key = jax.random.PRNGKey(0)
    kx, kp1, kp2 = jax.random.split(key, 3)

    # bf16 MXU operands with f32 accumulation -> loosened tolerances.
    ATOL = RTOL = 3e-2

    # Case 1: in_channels != out_channels -> conv skip path (stride 2).
    N, Cin, Cout, H, W, stride = 2, 4, 8, 16, 16, 2
    x = jax.random.normal(kx, (N, Cin, H, W), jnp.float32)
    params = make_params(kp1, Cin, Cout, has_skip_conv=True)
    out = residual_block_forward(x, params, stride=stride, has_skip_conv=True)
    out = jax.block_until_ready(out)
    ref = residual_block_reference(x, params, stride=stride, has_skip_conv=True)
    assert out.shape == (N, Cout, H // 2, W // 2), out.shape
    assert jnp.allclose(out, ref, atol=ATOL, rtol=RTOL), float(jnp.max(jnp.abs(out - ref)))

    # Case 2: in_channels == out_channels -> identity skip (stride 1).
    params_id = make_params(kp2, Cin, Cin, has_skip_conv=False)
    out_id = residual_block_forward(x, params_id, stride=1, has_skip_conv=False)
    out_id = jax.block_until_ready(out_id)
    ref_id = residual_block_reference(x, params_id, stride=1, has_skip_conv=False)
    assert out_id.shape == (N, Cin, H, W), out_id.shape
    assert jnp.allclose(out_id, ref_id, atol=ATOL, rtol=RTOL), float(jnp.max(jnp.abs(out_id - ref_id)))

    print("KERNEL_OK")
</pallas_src>

<mosaic_0001>
module attributes {stable_mosaic.version = 11 : i64} {
  func.func @_residual_block_kernel(%arg0: i32, %arg1: i32, %arg2: memref<1x21x18x128xf32, #tpu.memory_space<vmem>>, %arg3: memref<3x384x128xbf16, #tpu.memory_space<vmem>>, %arg4: memref<1x128xf32, #tpu.memory_space<vmem>>, %arg5: memref<3x384x128xbf16, #tpu.memory_space<vmem>>, %arg6: memref<1x128xf32, #tpu.memory_space<vmem>>, %arg7: memref<128x128xbf16, #tpu.memory_space<vmem>>, %arg8: memref<1x128xf32, #tpu.memory_space<vmem>>, %arg9: memref<1x4x8x128xf32, #tpu.memory_space<vmem>>, %arg10: memref<6x10x128xf32, #tpu.memory_space<vmem>>) attributes {dimension_semantics = [#tpu.dimension_semantics<parallel>, #tpu.dimension_semantics<parallel>], iteration_bounds = array<i64: 2, 2>, scalar_prefetch = 0 : i64, scratch_operands = 1 : i64, tpu.core_type = #tpu.core_type<tc>, window_params = [{transform_indices = @transform_0, window_bounds = array<i64: 1, 21, 18, 128>}, {pipeline_mode = #tpu.pipeline_mode<synchronous>, transform_indices = @transform_1, window_bounds = array<i64: 3, 384, 128>}, {pipeline_mode = #tpu.pipeline_mode<synchronous>, transform_indices = @transform_2, window_bounds = array<i64: 1, 128>}, {pipeline_mode = #tpu.pipeline_mode<synchronous>, transform_indices = @transform_3, window_bounds = array<i64: 3, 384, 128>}, {pipeline_mode = #tpu.pipeline_mode<synchronous>, transform_indices = @transform_4, window_bounds = array<i64: 1, 128>}, {pipeline_mode = #tpu.pipeline_mode<synchronous>, transform_indices = @transform_5, window_bounds = array<i64: 128, 128>}, {pipeline_mode = #tpu.pipeline_mode<synchronous>, transform_indices = @transform_6, window_bounds = array<i64: 1, 128>}, {transform_indices = @transform_7, window_bounds = array<i64: 1, 4, 8, 128>}]} {
    %c8_i32 = arith.constant 8 : i32
    %0 = arith.muli %arg1, %c8_i32 : i32
    %1 = tpu.assume_multiple %0, 8 : i32
    %cst = arith.constant 0.000000e+00 : f32
    %2 = vector.broadcast %cst : f32 to vector<48x128xf32>
    %c0_i32 = arith.constant 0 : i32
    %3 = arith.addi %1, %c0_i32 : i32
    %c0 = arith.constant 0 : index
    %4 = arith.index_cast %3 : i32 to index
    %c0_0 = arith.constant 0 : index
    %c0_1 = arith.constant 0 : index
    %5 = tpu.strided_load %arg2[%c0, %4, %c0_0, %c0_1] {strides = array<i32: 1, 2, 2, 1>} : memref<1x21x18x128xf32, #tpu.memory_space<vmem>>, vector<1x6x8x128xf32>
    %6 = vector.shape_cast %5 : vector<1x6x8x128xf32> to vector<6x8x128xf32>
    %7 = vector.shape_cast %6 : vector<6x8x128xf32> to vector<48x128xf32>
    %c0_i32_2 = arith.constant 0 : i32
    %8 = arith.addi %1, %c0_i32_2 : i32
    %c0_3 = arith.constant 0 : index
    %9 = arith.index_cast %8 : i32 to index
    %c1 = arith.constant 1 : index
    %c0_4 = arith.constant 0 : index
    %10 = tpu.strided_load %arg2[%c0_3, %9, %c1, %c0_4] {strides = array<i32: 1, 2, 2, 1>} : memref<1x21x18x128xf32, #tpu.memory_space<vmem>>, vector<1x6x8x128xf32>
    %11 = vector.shape_cast %10 : vector<1x6x8x128xf32> to vector<6x8x128xf32>
    %12 = vector.shape_cast %11 : vector<6x8x128xf32> to vector<48x128xf32>
    %c0_i32_5 = arith.constant 0 : i32
    %13 = arith.addi %1, %c0_i32_5 : i32
    %c0_6 = arith.constant 0 : index
    %14 = arith.index_cast %13 : i32 to index
    %c2 = arith.constant 2 : index
    %c0_7 = arith.constant 0 : index
    %15 = tpu.strided_load %arg2[%c0_6, %14, %c2, %c0_7] {strides = array<i32: 1, 2, 2, 1>} : memref<1x21x18x128xf32, #tpu.memory_space<vmem>>, vector<1x6x8x128xf32>
    %16 = vector.shape_cast %15 : vector<1x6x8x128xf32> to vector<6x8x128xf32>
    %17 = vector.shape_cast %16 : vector<6x8x128xf32> to vector<48x128xf32>
    %18 = tpu.concatenate %7, %12, %17 in 1 : vector<48x128xf32>, vector<48x128xf32>, vector<48x128xf32> -> vector<48x384xf32>
    %19 = arith.truncf %18 : vector<48x384xf32> to vector<48x384xbf16>
    %c0_8 = arith.constant 0 : index
    %c0_9 = arith.constant 0 : index
    %c0_10 = arith.constant 0 : index
    %20 = vector.load %arg3[%c0_8, %c0_9, %c0_10] : memref<3x384x128xbf16, #tpu.memory_space<vmem>>, vector<1x384x128xbf16>
    %21 = vector.shape_cast %20 : vector<1x384x128xbf16> to vector<384x128xbf16>
    %cst_11 = arith.constant dense<0.000000e+00> : vector<48x128xf32>
    %22 = tpu.matmul %19, %21, %cst_11 {dimension_numbers = #tpu.dot_dimension_numbers<[1], [0], [0], [1], [0, 0, 1, 1], [], []>} : vector<48x384xbf16>, vector<384x128xbf16>, vector<48x128xf32> -> vector<48x128xf32>
    %23 = arith.addf %2, %22 : vector<48x128xf32>
    %c1_i32 = arith.constant 1 : i32
    %24 = arith.addi %1, %c1_i32 : i32
    %c0_12 = arith.constant 0 : index
    %25 = arith.index_cast %24 : i32 to index
    %c0_13 = arith.constant 0 : index
    %c0_14 = arith.constant 0 : index
    %26 = tpu.strided_load %arg2[%c0_12, %25, %c0_13, %c0_14] {strides = array<i32: 1, 2, 2, 1>} : memref<1x21x18x128xf32, #tpu.memory_space<vmem>>, vector<1x6x8x128xf32>
    %27 = vector.shape_cast %26 : vector<1x6x8x128xf32> to vector<6x8x128xf32>
    %28 = vector.shape_cast %27 : vector<6x8x128xf32> to vector<48x128xf32>
    %c1_i32_15 = arith.constant 1 : i32
    %29 = arith.addi %1, %c1_i32_15 : i32
    %c0_16 = arith.constant 0 : index
    %30 = arith.index_cast %29 : i32 to index
    %c1_17 = arith.constant 1 : index
    %c0_18 = arith.constant 0 : index
    %31 = tpu.strided_load %arg2[%c0_16, %30, %c1_17, %c0_18] {strides = array<i32: 1, 2, 2, 1>} : memref<1x21x18x128xf32, #tpu.memory_space<vmem>>, vector<1x6x8x128xf32>
    %32 = vector.shape_cast %31 : vector<1x6x8x128xf32> to vector<6x8x128xf32>
    %33 = vector.shape_cast %32 : vector<6x8x128xf32> to vector<48x128xf32>
    %c1_i32_19 = arith.constant 1 : i32
    %34 = arith.addi %1, %c1_i32_19 : i32
    %c0_20 = arith.constant 0 : index
    %35 = arith.index_cast %34 : i32 to index
    %c2_21 = arith.constant 2 : index
    %c0_22 = arith.constant 0 : index
    %36 = tpu.strided_load %arg2[%c0_20, %35, %c2_21, %c0_22] {strides = array<i32: 1, 2, 2, 1>} : memref<1x21x18x128xf32, #tpu.memory_space<vmem>>, vector<1x6x8x128xf32>
    %37 = vector.shape_cast %36 : vector<1x6x8x128xf32> to vector<6x8x128xf32>
    %38 = vector.shape_cast %37 : vector<6x8x128xf32> to vector<48x128xf32>
    %39 = tpu.concatenate %28, %33, %38 in 1 : vector<48x128xf32>, vector<48x128xf32>, vector<48x128xf32> -> vector<48x384xf32>
    %40 = arith.truncf %39 : vector<48x384xf32> to vector<48x384xbf16>
    %c1_23 = arith.constant 1 : index
    %c0_24 = arith.constant 0 : index
    %c0_25 = arith.constant 0 : index
    %41 = vector.load %arg3[%c1_23, %c0_24, %c0_25] : memref<3x384x128xbf16, #tpu.memory_space<vmem>>, vector<1x384x128xbf16>
    %42 = vector.shape_cast %41 : vector<1x384x128xbf16> to vector<384x128xbf16>
    %cst_26 = arith.constant dense<0.000000e+00> : vector<48x128xf32>
    %43 = tpu.matmul %40, %42, %cst_26 {dimension_numbers = #tpu.dot_dimension_numbers<[1], [0], [0], [1], [0, 0, 1, 1], [], []>} : vector<48x384xbf16>, vector<384x128xbf16>, vector<48x128xf32> -> vector<48x128xf32>
    %44 = arith.addf %23, %43 : vector<48x128xf32>
    %c2_i32 = arith.constant 2 : i32
    %45 = arith.addi %1, %c2_i32 : i32
    %c0_27 = arith.constant 0 : index
    %46 = arith.index_cast %45 : i32 to index
    %c0_28 = arith.constant 0 : index
    %c0_29 = arith.constant 0 : index
    %47 = tpu.strided_load %arg2[%c0_27, %46, %c0_28, %c0_29] {strides = array<i32: 1, 2, 2, 1>} : memref<1x21x18x128xf32, #tpu.memory_space<vmem>>, vector<1x6x8x128xf32>
    %48 = vector.shape_cast %47 : vector<1x6x8x128xf32> to vector<6x8x128xf32>
    %49 = vector.shape_cast %48 : vector<6x8x128xf32> to vector<48x128xf32>
    %c2_i32_30 = arith.constant 2 : i32
    %50 = arith.addi %1, %c2_i32_30 : i32
    %c0_31 = arith.constant 0 : index
    %51 = arith.index_cast %50 : i32 to index
    %c1_32 = arith.constant 1 : index
    %c0_33 = arith.constant 0 : index
    %52 = tpu.strided_load %arg2[%c0_31, %51, %c1_32, %c0_33] {strides = array<i32: 1, 2, 2, 1>} : memref<1x21x18x128xf32, #tpu.memory_space<vmem>>, vector<1x6x8x128xf32>
    %53 = vector.shape_cast %52 : vector<1x6x8x128xf32> to vector<6x8x128xf32>
    %54 = vector.shape_cast %53 : vector<6x8x128xf32> to vector<48x128xf32>
    %c2_i32_34 = arith.constant 2 : i32
    %55 = arith.addi %1, %c2_i32_34 : i32
    %c0_35 = arith.constant 0 : index
    %56 = arith.index_cast %55 : i32 to index
    %c2_36 = arith.constant 2 : index
    %c0_37 = arith.constant 0 : index
    %57 = tpu.strided_load %arg2[%c0_35, %56, %c2_36, %c0_37] {strides = array<i32: 1, 2, 2, 1>} : memref<1x21x18x128xf32, #tpu.memory_space<vmem>>, vector<1x6x8x128xf32>
    %58 = vector.shape_cast %57 : vector<1x6x8x128xf32> to vector<6x8x128xf32>
    %59 = vector.shape_cast %58 : vector<6x8x128xf32> to vector<48x128xf32>
    %60 = tpu.concatenate %49, %54, %59 in 1 : vector<48x128xf32>, vector<48x128xf32>, vector<48x128xf32> -> vector<48x384xf32>
    %61 = arith.truncf %60 : vector<48x384xf32> to vector<48x384xbf16>
    %c2_38 = arith.constant 2 : index
    %c0_39 = arith.constant 0 : index
    %c0_40 = arith.constant 0 : index
    %62 = vector.load %arg3[%c2_38, %c0_39, %c0_40] : memref<3x384x128xbf16, #tpu.memory_space<vmem>>, vector<1x384x128xbf16>
    %63 = vector.shape_cast %62 : vector<1x384x128xbf16> to vector<384x128xbf16>
    %cst_41 = arith.constant dense<0.000000e+00> : vector<48x128xf32>
    %64 = tpu.matmul %61, %63, %cst_41 {dimension_numbers = #tpu.dot_dimension_numbers<[1], [0], [0], [1], [0, 0, 1, 1], [], []>} : vector<48x384xbf16>, vector<384x128xbf16>, vector<48x128xf32> -> vector<48x128xf32>
    %65 = arith.addf %44, %64 : vector<48x128xf32>
    %c0_42 = arith.constant 0 : index
    %c0_43 = arith.constant 0 : index
    %66 = vector.load %arg4[%c0_42, %c0_43] : memref<1x128xf32, #tpu.memory_space<vmem>>, vector<1x128xf32>
    %67 = vector.broadcast %66 : vector<1x128xf32> to vector<48x128xf32>
    %68 = arith.addf %65, %67 : vector<48x128xf32>
    %cst_44 = arith.constant 0.000000e+00 : f32
    %69 = vector.broadcast %cst_44 : f32 to vector<48x128xf32>
    %70 = arith.maximumf %68, %69 : vector<48x128xf32>
    %71 = vector.shape_cast %70 : vector<48x128xf32> to vector<6x8x128xf32>
    %72 = tpu.iota {dimensions = array<i32: 0>} : vector<6x8x128xi32>
    %c4_i32 = arith.constant 4 : i32
    %73 = arith.muli %arg1, %c4_i32 : i32
    %c1_i32_45 = arith.constant 1 : i32
    %74 = arith.subi %73, %c1_i32_45 : i32
    %75 = vector.broadcast %74 : i32 to vector<6x8x128xi32>
    %76 = arith.addi %72, %75 : vector<6x8x128xi32>
    %c0_i32_46 = arith.constant 0 : i32
    %77 = vector.broadcast %c0_i32_46 : i32 to vector<6x8x128xi32>
    %78 = arith.cmpi sge, %76, %77 : vector<6x8x128xi32>
    %c8_i32_47 = arith.constant 8 : i32
    %79 = vector.broadcast %c8_i32_47 : i32 to vector<6x8x128xi32>
    %80 = arith.cmpi slt, %76, %79 : vector<6x8x128xi32>
    %81 = arith.andi %78, %80 : vector<6x8x128xi1>
    %cst_48 = arith.constant 0.000000e+00 : f32
    %82 = vector.broadcast %cst_48 : f32 to vector<6x8x128xf32>
    %83 = arith.select %81, %71, %82 : vector<6x8x128xi1>, vector<6x8x128xf32>
    %c0_49 = arith.constant 0 : index
    %c1_50 = arith.constant 1 : index
    %c0_51 = arith.constant 0 : index
    %84 = vector.load %arg10[%c0_49, %c1_50, %c0_51] : memref<6x10x128xf32, #tpu.memory_space<vmem>>, vector<6x8x128xf32>
    tpu.vector_store %arg10[%c0_49, %c1_50, %c0_51], %83 {strides = array<i32>} : memref<6x10x128xf32, #tpu.memory_space<vmem>>, vector<6x8x128xf32>,
    %cst_52 = arith.constant 0.000000e+00 : f32
    %85 = vector.broadcast %cst_52 : f32 to vector<6x1x128xf32>
    %c0_53 = arith.constant 0 : index
    %c0_54 = arith.constant 0 : index
    %c0_55 = arith.constant 0 : index
    %86 = vector.load %arg10[%c0_53, %c0_54, %c0_55] : memref<6x10x128xf32, #tpu.memory_space<vmem>>, vector<6x1x128xf32>
    tpu.vector_store %arg10[%c0_53, %c0_54, %c0_55], %85 {strides = array<i32>} : memref<6x10x128xf32, #tpu.memory_space<vmem>>, vector<6x1x128xf32>,
    %c0_56 = arith.constant 0 : index
    %c9 = arith.constant 9 : index
    %c0_57 = arith.constant 0 : index
    %87 = vector.load %arg10[%c0_56, %c9, %c0_57] : memref<6x10x128xf32, #tpu.memory_space<vmem>>, vector<6x1x128xf32>
    tpu.vector_store %arg10[%c0_56, %c9, %c0_57], %85 {strides = array<i32>} : memref<6x10x128xf32, #tpu.memory_space<vmem>>, vector<6x1x128xf32>,
    %cst_58 = arith.constant 0.000000e+00 : f32
    %88 = vector.broadcast %cst_58 : f32 to vector<32x128xf32>
    %c0_59 = arith.constant 0 : index
    %c0_60 = arith.constant 0 : index
    %c0_61 = arith.constant 0 : index
    %89 = vector.load %arg10[%c0_59, %c0_60, %c0_61] : memref<6x10x128xf32, #tpu.memory_space<vmem>>, vector<4x8x128xf32>
    %90 = vector.shape_cast %89 : vector<4x8x128xf32> to vector<32x128xf32>
    %c0_62 = arith.constant 0 : index
    %c1_63 = arith.constant 1 : index
    %c0_64 = arith.constant 0 : index
    %91 = vector.load %arg10[%c0_62, %c1_63, %c0_64] : memref<6x10x128xf32, #tpu.memory_space<vmem>>, vector<4x8x128xf32>
    %92 = vector.shape_cast %91 : vector<4x8x128xf32> to vector<32x128xf32>
    %c0_65 = arith.constant 0 : index
    %c2_66 = arith.constant 2 : index
    %c0_67 = arith.constant 0 : index
    %93 = vector.load %arg10[%c0_65, %c2_66, %c0_67] : memref<6x10x128xf32, #tpu.memory_space<vmem>>, vector<4x8x128xf32>
    %94 = vector.shape_cast %93 : vector<4x8x128xf32> to vector<32x128xf32>
    %95 = tpu.concatenate %90, %92, %94 in 1 : vector<32x128xf32>, vector<32x128xf32>, vector<32x128xf32> -> vector<32x384xf32>
    %96 = arith.truncf %95 : vector<32x384xf32> to vector<32x384xbf16>
    %c0_68 = arith.constant 0 : index
    %c0_69 = arith.constant 0 : index
    %c0_70 = arith.constant 0 : index
    %97 = vector.load %arg5[%c0_68, %c0_69, %c0_70] : memref<3x384x128xbf16, #tpu.memory_space<vmem>>, vector<1x384x128xbf16>
    %98 = vector.shape_cast %97 : vector<1x384x128xbf16> to vector<384x128xbf16>
    %cst_71 = arith.constant dense<0.000000e+00> : vector<32x128xf32>
    %99 = tpu.matmul %96, %98, %cst_71 {dimension_numbers = #tpu.dot_dimension_numbers<[1], [0], [0], [1], [0, 0, 1, 1], [], []>} : vector<32x384xbf16>, vector<384x128xbf16>, vector<32x128xf32> -> vector<32x128xf32>
    %100 = arith.addf %88, %99 : vector<32x128xf32>
    %c1_72 = arith.constant 1 : index
    %c0_73 = arith.constant 0 : index
    %c0_74 = arith.constant 0 : index
    %101 = vector.load %arg10[%c1_72, %c0_73, %c0_74] : memref<6x10x128xf32, #tpu.memory_space<vmem>>, vector<4x8x128xf32>
    %102 = vector.shape_cast %101 : vector<4x8x128xf32> to vector<32x128xf32>
    %c1_75 = arith.constant 1 : index
    %c1_76 = arith.constant 1 : index
    %c0_77 = arith.constant 0 : index
    %103 = vector.load %arg10[%c1_75, %c1_76, %c0_77] : memref<6x10x128xf32, #tpu.memory_space<vmem>>, vector<4x8x128xf32>
    %104 = vector.shape_cast %103 : vector<4x8x128xf32> to vector<32x128xf32>
    %c1_78 = arith.constant 1 : index
    %c2_79 = arith.constant 2 : index
    %c0_80 = arith.constant 0 : index
    %105 = vector.load %arg10[%c1_78, %c2_79, %c0_80] : memref<6x10x128xf32, #tpu.memory_space<vmem>>, vector<4x8x128xf32>
    %106 = vector.shape_cast %105 : vector<4x8x128xf32> to vector<32x128xf32>
    %107 = tpu.concatenate %102, %104, %106 in 1 : vector<32x128xf32>, vector<32x128xf32>, vector<32x128xf32> -> vector<32x384xf32>
    %108 = arith.truncf %107 : vector<32x384xf32> to vector<32x384xbf16>
    %c1_81 = arith.constant 1 : index
    %c0_82 = arith.constant 0 : index
    %c0_83 = arith.constant 0 : index
    %109 = vector.load %arg5[%c1_81, %c0_82, %c0_83] : memref<3x384x128xbf16, #tpu.memory_space<vmem>>, vector<1x384x128xbf16>
    %110 = vector.shape_cast %109 : vector<1x384x128xbf16> to vector<384x128xbf16>
    %cst_84 = arith.constant dense<0.000000e+00> : vector<32x128xf32>
    %111 = tpu.matmul %108, %110, %cst_84 {dimension_numbers = #tpu.dot_dimension_numbers<[1], [0], [0], [1], [0, 0, 1, 1], [], []>} : vector<32x384xbf16>, vector<384x128xbf16>, vector<32x128xf32> -> vector<32x128xf32>
    %112 = arith.addf %100, %111 : vector<32x128xf32>
    %c2_85 = arith.constant 2 : index
    %c0_86 = arith.constant 0 : index
    %c0_87 = arith.constant 0 : index
    %113 = vector.load %arg10[%c2_85, %c0_86, %c0_87] : memref<6x10x128xf32, #tpu.memory_space<vmem>>, vector<4x8x128xf32>
    %114 = vector.shape_cast %113 : vector<4x8x128xf32> to vector<32x128xf32>
    %c2_88 = arith.constant 2 : index
    %c1_89 = arith.constant 1 : index
    %c0_90 = arith.constant 0 : index
    %115 = vector.load %arg10[%c2_88, %c1_89, %c0_90] : memref<6x10x128xf32, #tpu.memory_space<vmem>>, vector<4x8x128xf32>
    %116 = vector.shape_cast %115 : vector<4x8x128xf32> to vector<32x128xf32>
    %c2_91 = arith.constant 2 : index
    %c2_92 = arith.constant 2 : index
    %c0_93 = arith.constant 0 : index
    %117 = vector.load %arg10[%c2_91, %c2_92, %c0_93] : memref<6x10x128xf32, #tpu.memory_space<vmem>>, vector<4x8x128xf32>
    %118 = vector.shape_cast %117 : vector<4x8x128xf32> to vector<32x128xf32>
    %119 = tpu.concatenate %114, %116, %118 in 1 : vector<32x128xf32>, vector<32x128xf32>, vector<32x128xf32> -> vector<32x384xf32>
    %120 = arith.truncf %119 : vector<32x384xf32> to vector<32x384xbf16>
    %c2_94 = arith.constant 2 : index
    %c0_95 = arith.constant 0 : index
    %c0_96 = arith.constant 0 : index
    %121 = vector.load %arg5[%c2_94, %c0_95, %c0_96] : memref<3x384x128xbf16, #tpu.memory_space<vmem>>, vector<1x384x128xbf16>
    %122 = vector.shape_cast %121 : vector<1x384x128xbf16> to vector<384x128xbf16>
    %cst_97 = arith.constant dense<0.000000e+00> : vector<32x128xf32>
    %123 = tpu.matmul %120, %122, %cst_97 {dimension_numbers = #tpu.dot_dimension_numbers<[1], [0], [0], [1], [0, 0, 1, 1], [], []>} : vector<32x384xbf16>, vector<384x128xbf16>, vector<32x128xf32> -> vector<32x128xf32>
    %124 = arith.addf %112, %123 : vector<32x128xf32>
    %c0_98 = arith.constant 0 : index
    %c0_99 = arith.constant 0 : index
    %125 = vector.load %arg6[%c0_98, %c0_99] : memref<1x128xf32, #tpu.memory_space<vmem>>, vector<1x128xf32>
    %126 = vector.broadcast %125 : vector<1x128xf32> to vector<32x128xf32>
    %127 = arith.addf %124, %126 : vector<32x128xf32>
    %c2_i32_100 = arith.constant 2 : i32
    %128 = arith.muli %c2_i32_100, %arg1 : i32
    %c4_i32_101 = arith.constant 4 : i32
    %129 = arith.muli %128, %c4_i32_101 : i32
    %c1_i32_102 = arith.constant 1 : i32
    %130 = arith.addi %129, %c1_i32_102 : i32
    %c2_i32_103 = arith.constant 2 : i32
    %131 = arith.addi %130, %c2_i32_103 : i32
    %c0_104 = arith.constant 0 : index
    %132 = arith.index_cast %131 : i32 to index
    %c1_105 = arith.constant 1 : index
    %c0_106 = arith.constant 0 : index
    %133 = tpu.strided_load %arg2[%c0_104, %132, %c1_105, %c0_106] {strides = array<i32: 1, 2, 2, 1>} : memref<1x21x18x128xf32, #tpu.memory_space<vmem>>, vector<1x4x8x128xf32>
    %134 = vector.shape_cast %133 : vector<1x4x8x128xf32> to vector<4x8x128xf32>
    %135 = vector.shape_cast %134 : vector<4x8x128xf32> to vector<32x128xf32>
    %136 = arith.truncf %135 : vector<32x128xf32> to vector<32x128xbf16>
    %c0_107 = arith.constant 0 : index
    %c0_108 = arith.constant 0 : index
    %137 = vector.load %arg7[%c0_107, %c0_108] : memref<128x128xbf16, #tpu.memory_space<vmem>>, vector<128x128xbf16>
    %cst_109 = arith.constant dense<0.000000e+00> : vector<32x128xf32>
    %138 = tpu.matmul %136, %137, %cst_109 {dimension_numbers = #tpu.dot_dimension_numbers<[1], [0], [0], [1], [0, 0, 1, 1], [], []>} : vector<32x128xbf16>, vector<128x128xbf16>, vector<32x128xf32> -> vector<32x128xf32>
    %c0_110 = arith.constant 0 : index
    %c0_111 = arith.constant 0 : index
    %139 = vector.load %arg8[%c0_110, %c0_111] : memref<1x128xf32, #tpu.memory_space<vmem>>, vector<1x128xf32>
    %140 = vector.broadcast %139 : vector<1x128xf32> to vector<32x128xf32>
    %141 = arith.addf %138, %140 : vector<32x128xf32>
    %142 = arith.addf %127, %141 : vector<32x128xf32>
    %cst_112 = arith.constant 0.000000e+00 : f32
    %143 = vector.broadcast %cst_112 : f32 to vector<32x128xf32>
    %144 = arith.maximumf %142, %143 : vector<32x128xf32>
    %145 = vector.shape_cast %144 : vector<32x128xf32> to vector<4x8x128xf32>
    %c0_113 = arith.constant 0 : index
    %c0_114 = arith.constant 0 : index
    %c0_115 = arith.constant 0 : index
    %c0_116 = arith.constant 0 : index
    %146 = vector.load %arg9[%c0_113, %c0_114, %c0_115, %c0_116] : memref<1x4x8x128xf32, #tpu.memory_space<vmem>>, vector<1x4x8x128xf32>
    %147 = vector.shape_cast %146 : vector<1x4x8x128xf32> to vector<4x8x128xf32>
    %148 = vector.shape_cast %145 : vector<4x8x128xf32> to vector<1x4x8x128xf32>
    tpu.vector_store %arg9[%c0_113, %c0_114, %c0_115, %c0_116], %148 {strides = array<i32>} : memref<1x4x8x128xf32, #tpu.memory_space<vmem>>, vector<1x4x8x128xf32>,
    return
  }
  func.func @transform_0(%arg0: i32, %arg1: i32) -> (i32, i32, i32, i32) {
    %c0_i32 = arith.constant 0 : i32
    %c0_i32_0 = arith.constant 0 : i32
    %c0_i32_1 = arith.constant 0 : i32
    %c0_i32_2 = arith.constant 0 : i32
    return %arg0, %c0_i32, %c0_i32_0, %c0_i32_1 : i32, i32, i32, i32
  }
  func.func @transform_1(%arg0: i32, %arg1: i32) -> (i32, i32, i32) {
    %c0_i32 = arith.constant 0 : i32
    %c0_i32_0 = arith.constant 0 : i32
    %c0_i32_1 = arith.constant 0 : i32
    %c0_i32_2 = arith.constant 0 : i32
    return %c0_i32, %c0_i32_0, %c0_i32_1 : i32, i32, i32
  }
  func.func @transform_2(%arg0: i32, %arg1: i32) -> (i32, i32) {
    %c0_i32 = arith.constant 0 : i32
    %c0_i32_0 = arith.constant 0 : i32
    %c0_i32_1 = arith.constant 0 : i32
    return %c0_i32, %c0_i32_0 : i32, i32
  }
  func.func @transform_3(%arg0: i32, %arg1: i32) -> (i32, i32, i32) {
    %c0_i32 = arith.constant 0 : i32
    %c0_i32_0 = arith.constant 0 : i32
    %c0_i32_1 = arith.constant 0 : i32
    %c0_i32_2 = arith.constant 0 : i32
    return %c0_i32, %c0_i32_0, %c0_i32_1 : i32, i32, i32
  }
  func.func @transform_4(%arg0: i32, %arg1: i32) -> (i32, i32) {
    %c0_i32 = arith.constant 0 : i32
    %c0_i32_0 = arith.constant 0 : i32
    %c0_i32_1 = arith.constant 0 : i32
    return %c0_i32, %c0_i32_0 : i32, i32
  }
  func.func @transform_5(%arg0: i32, %arg1: i32) -> (i32, i32) {
    %c0_i32 = arith.constant 0 : i32
    %c0_i32_0 = arith.constant 0 : i32
    %c0_i32_1 = arith.constant 0 : i32
    return %c0_i32, %c0_i32_0 : i32, i32
  }
  func.func @transform_6(%arg0: i32, %arg1: i32) -> (i32, i32) {
    %c0_i32 = arith.constant 0 : i32
    %c0_i32_0 = arith.constant 0 : i32
    %c0_i32_1 = arith.constant 0 : i32
    return %c0_i32, %c0_i32_0 : i32, i32
  }
  func.func @transform_7(%arg0: i32, %arg1: i32) -> (i32, i32, i32, i32) {
    %c0_i32 = arith.constant 0 : i32
    %c0_i32_0 = arith.constant 0 : i32
    %c0_i32_1 = arith.constant 0 : i32
    return %arg0, %arg1, %c0_i32, %c0_i32_0 : i32, i32, i32, i32
  }
}

</mosaic_0001>

<llo_original>
// kernel: tpu_custom_call.1
$region0: #{tpu_custom_call.1}
  #allocation0 [shape = 'u32[]', space=smem, size = 0x4, offset = 0x4, fixed_abs, tag = 'smem constant byte address 0x4 - core index']
  #allocation1 [shape = 'u32[144,128]{1,0:T(1,128)}', space=vmem, size = 0x12000, scoped, tag = 'internal scratch']
  #allocation2 [shape = 'f32[6,10,128]{2,1,0:T(8,128)}', space=vmem, size = 0xc000, scoped, tag = 'scratch operand']
  %s0 = inlined_call_operand.vmem [shape: f32[2,21,18,128], index: 0, kind: input, shape index: {}]
  %s1 = inlined_call_operand.vmem [shape: bf16[3,384,128], index: 1, kind: input, shape index: {}]
  %s2 = inlined_call_operand.vmem [shape: f32[1,128], index: 2, kind: input, shape index: {}]
  %s3 = inlined_call_operand.vmem [shape: bf16[3,384,128], index: 3, kind: input, shape index: {}]
  %s4 = inlined_call_operand.vmem [shape: f32[1,128], index: 4, kind: input, shape index: {}]
  %s5 = inlined_call_operand.vmem [shape: bf16[128,128], index: 5, kind: input, shape index: {}]
  %s6 = inlined_call_operand.vmem [shape: f32[1,128], index: 6, kind: input, shape index: {}]
  %s7 = inlined_call_operand.hbm [shape: f32[2,8,8,128], index: 7, kind: output, shape index: {}]
  %s8 = sld [smem:[#allocation0]]
  $region61: #{tpu_custom_call.1} parent=0
    _
  %s10 = ssub.s32 1, %s8
  %s11 = scalar_select 0, %s10, %s8
  $region1: #{tpu_custom_call.1} parent=0
    #allocation3 [shape = 'u8[32768]{0}', space=vmem, size = 0x8000, scoped, tag = 'output window, operand 0']
    #allocation4 [shape = 's32[2]{0}', space=sflag, size = 0x8, scoped, tag = 'scoped memory for tpu_custom_call.1']
    %12 = vsyncpa [#allocation4], 0
    %s13 = scalar_lea.sflag [#allocation4], 1
    %14 = vsyncpa %s13, 0
    loop: start=0, step=1, limit=6
    $region2: #{tpu_custom_call.1} parent=1 // loop_pre_header
      _
    $region3: #{tpu_custom_call.1} parent=1 // loop_header
      %s16 = sphi 0, %s20
      %p17 = scmp.ge.s32.totalorder %s16, 6
      %s23 = sphi 0, %s35
      %s24 = sphi 0, %s31
      %s25 = sphi 0, %s23
      %s26 = sphi 0, %s24
      %s27 = sphi 0, %s25
      %s28 = sphi 0, %s26
      %s38 = sphi 0, %s40
      %s41 = sphi 0, %s38
      %s42 = sphi 0, %s41
      %s58 = sphi 0, %s42
      %s62 = sphi 0, %s62
      %s64 = sphi 0, %s62
      %s65 = sphi 0, %s64
      %s79 = sphi 0, %s65
      %s83 = sphi 0, %s83
      %s85 = sphi 0, %s83
      %s86 = sphi 0, %s85
      %s100 = sphi 0, %s86
      %s104 = sphi 0, %s104
      %s106 = sphi 0, %s104
      %s107 = sphi 0, %s106
      %s121 = sphi 0, %s107
      %s125 = sphi 0, %s125
      %s127 = sphi 0, %s125
      %s128 = sphi 0, %s127
      %s142 = sphi 0, %s128
      %s146 = sphi 0, %s146
      %s148 = sphi 0, %s146
      %s149 = sphi 0, %s148
      %s163 = sphi 0, %s149
      %s167 = sphi 0, %s167
      %s169 = sphi 0, %s167
      %s170 = sphi 0, %s169
      %s184 = sphi 0, %s170
      %s192 = sphi 0, %s194
      %s195 = sphi 0, %s192
      %s196 = sphi 0, %s195
      %s212 = sphi 0, %s196
    $region4: #{tpu_custom_call.1} parent=1 // loop_header_branch
      %19 = sbr.rel (%p17) target = $region8
    $region5: #{tpu_custom_call.1} parent=1 // loop_body
      %s21 = ssub.s32 %s16, 1
      %s22 = ssub.s32 %s16, 2
      %s29 = sadd.s32 1, %s24
      %p30 = scmp.ge.s32.totalorder %s29, 2
      %s31 = scalar_select %p30, 0, %s29
      %s32 = sadd.s32 1, %s23
      %s33 = scalar_select %p30, %s32, %s23
      %p34 = scmp.ge.s32.totalorder %s33, 2
      %s35 = scalar_select %p34, 0, %s33
      %s36 = ssub.s32 %s23, %s35
      %p37 = scmp.eq.s32.totalorder %s36, 0
      %s39 = sadd.s32 %s38, 1
      %s40 = scalar_select %p37, %s38, %s39
      %p43 = pneg %p37
      %p44 = scmp.eq.s32.totalorder %s16, 3
      %p45 = por %p43, %p44
      %p46 = scmp.ne.s32.totalorder %s38, %s41
      %p47 = scmp.eq.s32.totalorder %s16, 0
      %p48 = por %p46, %p47
      %p49 = scmp.ne.s32.totalorder %s38, %s41
      %p50 = scmp.eq.s32.totalorder %s21, 3
      %p51 = por %p49, %p50
      %p52 = scmp.ne.s32.totalorder %s41, %s42
      %p53 = scmp.eq.s32.totalorder %s21, 0
      %p54 = por %p52, %p53
      %p55 = scmp.ne.s32.totalorder %s41, %s42
      %p56 = scmp.eq.s32.totalorder %s22, 3
      %p57 = por %p55, %p56
      %p59 = scmp.ne.s32.totalorder %s42, %s58
      %p60 = scmp.eq.s32.totalorder %s22, 0
      %p61 = por %p59, %p60
      %s63 = sadd.s32 %s62, 1
      %p66 = scmp.eq.s32.totalorder %s16, 3
      %p67 = scmp.ne.s32.totalorder %s62, %s64
      %p68 = scmp.eq.s32.totalorder %s16, 0
      %p69 = por %p67, %p68
      %p70 = scmp.ne.s32.totalorder %s62, %s64
      %p71 = scmp.eq.s32.totalorder %s21, 3
      %p72 = por %p70, %p71
      %p73 = scmp.ne.s32.totalorder %s64, %s65
      %p74 = scmp.eq.s32.totalorder %s21, 0
      %p75 = por %p73, %p74
      %p76 = scmp.ne.s32.totalorder %s64, %s65
      %p77 = scmp.eq.s32.totalorder %s22, 3
      %p78 = por %p76, %p77
      %p80 = scmp.ne.s32.totalorder %s65, %s79
      %p81 = scmp.eq.s32.totalorder %s22, 0
      %p82 = por %p80, %p81
      %s84 = sadd.s32 %s83, 1
      %p87 = scmp.eq.s32.totalorder %s16, 3
      %p88 = scmp.ne.s32.totalorder %s83, %s85
      %p89 = scmp.eq.s32.totalorder %s16, 0
      %p90 = por %p88, %p89
      %p91 = scmp.ne.s32.totalorder %s83, %s85
      %p92 = scmp.eq.s32.totalorder %s21, 3
      %p93 = por %p91, %p92
      %p94 = scmp.ne.s32.totalorder %s85, %s86
      %p95 = scmp.eq.s32.totalorder %s21, 0
      %p96 = por %p94, %p95
      %p97 = scmp.ne.s32.totalorder %s85, %s86
      %p98 = scmp.eq.s32.totalorder %s22, 3
      %p99 = por %p97, %p98
      %p101 = scmp.ne.s32.totalorder %s86, %s100
      %p102 = scmp.eq.s32.totalorder %s22, 0
      %p103 = por %p101, %p102
      %s105 = sadd.s32 %s104, 1
      %p108 = scmp.eq.s32.totalorder %s16, 3
      %p109 = scmp.ne.s32.totalorder %s104, %s106
      %p110 = scmp.eq.s32.totalorder %s16, 0
      %p111 = por %p109, %p110
      %p112 = scmp.ne.s32.totalorder %s104, %s106
      %p113 = scmp.eq.s32.totalorder %s21, 3
      %p114 = por %p112, %p113
      %p115 = scmp.ne.s32.totalorder %s106, %s107
      %p116 = scmp.eq.s32.totalorder %s21, 0
      %p117 = por %p115, %p116
      %p118 = scmp.ne.s32.totalorder %s106, %s107
      %p119 = scmp.eq.s32.totalorder %s22, 3
      %p120 = por %p118, %p119
      %p122 = scmp.ne.s32.totalorder %s107, %s121
      %p123 = scmp.eq.s32.totalorder %s22, 0
      %p124 = por %p122, %p123
      %s126 = sadd.s32 %s125, 1
      %p129 = scmp.eq.s32.totalorder %s16, 3
      %p130 = scmp.ne.s32.totalorder %s125, %s127
      %p131 = scmp.eq.s32.totalorder %s16, 0
      %p132 = por %p130, %p131
      %p133 = scmp.ne.s32.totalorder %s125, %s127
      %p134 = scmp.eq.s32.totalorder %s21, 3
      %p135 = por %p133, %p134
      %p136 = scmp.ne.s32.totalorder %s127, %s128
      %p137 = scmp.eq.s32.totalorder %s21, 0
      %p138 = por %p136, %p137
      %p139 = scmp.ne.s32.totalorder %s127, %s128
      %p140 = scmp.eq.s32.totalorder %s22, 3
      %p141 = por %p139, %p140
      %p143 = scmp.ne.s32.totalorder %s128, %s142
      %p144 = scmp.eq.s32.totalorder %s22, 0
      %p145 = por %p143, %p144
      %s147 = sadd.s32 %s146, 1
      %p150 = scmp.eq.s32.totalorder %s16, 3
      %p151 = scmp.ne.s32.totalorder %s146, %s148
      %p152 = scmp.eq.s32.totalorder %s16, 0
      %p153 = por %p151, %p152
      %p154 = scmp.ne.s32.totalorder %s146, %s148
      %p155 = scmp.eq.s32.totalorder %s21, 3
      %p156 = por %p154, %p155
      %p157 = scmp.ne.s32.totalorder %s148, %s149
      %p158 = scmp.eq.s32.totalorder %s21, 0
      %p159 = por %p157, %p158
      %p160 = scmp.ne.s32.totalorder %s148, %s149
      %p161 = scmp.eq.s32.totalorder %s22, 3
      %p162 = por %p160, %p161
      %p164 = scmp.ne.s32.totalorder %s149, %s163
      %p165 = scmp.eq.s32.totalorder %s22, 0
      %p166 = por %p164, %p165
      %s168 = sadd.s32 %s167, 1
      %p171 = scmp.eq.s32.totalorder %s16, 3
      %p172 = scmp.ne.s32.totalorder %s167, %s169
      %p173 = scmp.eq.s32.totalorder %s16, 0
      %p174 = por %p172, %p173
      %p175 = scmp.ne.s32.totalorder %s167, %s169
      %p176 = scmp.eq.s32.totalorder %s21, 3
      %p177 = por %p175, %p176
      %p178 = scmp.ne.s32.totalorder %s169, %s170
      %p179 = scmp.eq.s32.totalorder %s21, 0
      %p180 = por %p178, %p179
      %p181 = scmp.ne.s32.totalorder %s169, %s170
      %p182 = scmp.eq.s32.totalorder %s22, 3
      %p183 = por %p181, %p182
      %p185 = scmp.ne.s32.totalorder %s170, %s184
      %p186 = scmp.eq.s32.totalorder %s22, 0
      %p187 = por %p185, %p186
      %s188 = ssub.s32 %s23, %s35
      %s189 = ssub.s32 %s24, %s31
      %s190 = sor.u32 %s188, %s189
      %p191 = scmp.eq.s32.totalorder %s190, 0
      %s193 = sadd.s32 %s192, 1
      %s194 = scalar_select %p191, %s192, %s193
      %p197 = pneg %p191
      %p198 = scmp.eq.s32.totalorder %s16, 3
      %p199 = por %p197, %p198
      %p200 = scmp.ne.s32.totalorder %s192, %s195
      %p201 = scmp.eq.s32.totalorder %s16, 0
      %p202 = por %p200, %p201
      %p203 = scmp.ne.s32.totalorder %s192, %s195
      %p204 = scmp.eq.s32.totalorder %s21, 3
      %p205 = por %p203, %p204
      %p206 = scmp.ne.s32.totalorder %s195, %s196
      %p207 = scmp.eq.s32.totalorder %s21, 0
      %p208 = por %p206, %p207
      %p209 = scmp.ne.s32.totalorder %s195, %s196
      %p210 = scmp.eq.s32.totalorder %s22, 3
      %p211 = por %p209, %p210
      %p213 = scmp.ne.s32.totalorder %s196, %s212
      %p214 = scmp.eq.s32.totalorder %s22, 0
      %p215 = por %p213, %p214
      %p216 = scmp.le.s32.totalorder 1, %s16
      %p217 = scmp.lt.s32.totalorder %s16, 5
      %p218 = pnand %p216, %p217
      %p219 = pneg %p218
      // Predicated region
      $region9: #{tpu_custom_call.1} parent=5 // pred_check
        _
      $region10: #{tpu_custom_call.1} parent=5 // pred_check_branch
        %221 = sbr.rel (%p218) target = $region12
      $region11: #{tpu_custom_call.1} parent=5 // pred_region
        %s222 = ssub.s32 %s16, 1
        // Predicated region
        $region13: #{tpu_custom_call.1} parent=11 // pred_check
          %p223 = pneg %p75
        $region14: #{tpu_custom_call.1} parent=11 // pred_check_branch
          %225 = sbr.rel (%p223) target = $region16
        $region15: #{tpu_custom_call.1} parent=11 // pred_region
          _
        $region16: #{tpu_custom_call.1} parent=11 // pred_fallthru
          _
        // Predicated region
        $region17: #{tpu_custom_call.1} parent=11 // pred_check
          %p226 = pneg %p96
        $region18: #{tpu_custom_call.1} parent=11 // pred_check_branch
          %228 = sbr.rel (%p226) target = $region20
        $region19: #{tpu_custom_call.1} parent=11 // pred_region
          _
        $region20: #{tpu_custom_call.1} parent=11 // pred_fallthru
          _
        // Predicated region
        $region21: #{tpu_custom_call.1} parent=11 // pred_check
          %p229 = pneg %p117
        $region22: #{tpu_custom_call.1} parent=11 // pred_check_branch
          %231 = sbr.rel (%p229) target = $region24
        $region23: #{tpu_custom_call.1} parent=11 // pred_region
          _
        $region24: #{tpu_custom_call.1} parent=11 // pred_fallthru
          _
        // Predicated region
        $region25: #{tpu_custom_call.1} parent=11 // pred_check
          %p232 = pneg %p138
        $region26: #{tpu_custom_call.1} parent=11 // pred_check_branch
          %234 = sbr.rel (%p232) target = $region28
        $region27: #{tpu_custom_call.1} parent=11 // pred_region
          _
        $region28: #{tpu_custom_call.1} parent=11 // pred_fallthru
          _
        // Predicated region
        $region29: #{tpu_custom_call.1} parent=11 // pred_check
          %p235 = pneg %p159
        $region30: #{tpu_custom_call.1} parent=11 // pred_check_branch
          %237 = sbr.rel (%p235) target = $region32
        $region31: #{tpu_custom_call.1} parent=11 // pred_region
          _
        $region32: #{tpu_custom_call.1} parent=11 // pred_fallthru
          _
        // Predicated region
        $region33: #{tpu_custom_call.1} parent=11 // pred_check
          %p238 = pneg %p180
        $region34: #{tpu_custom_call.1} parent=11 // pred_check_branch
          %240 = sbr.rel (%p238) target = $region36
        $region35: #{tpu_custom_call.1} parent=11 // pred_region
          _
        $region36: #{tpu_custom_call.1} parent=11 // pred_fallthru
          _
      $region12: #{tpu_custom_call.1} parent=5 // pred_fallthru
        _
      %p241 = scmp.lt.s32.totalorder %s16, 4
      // Predicated region
      $region37: #{tpu_custom_call.1} parent=5 // pred_check
        %p242 = pneg %p241
      $region38: #{tpu_custom_call.1} parent=5 // pred_check_branch
        %244 = sbr.rel (%p242) target = $region40
      $region39: #{tpu_custom_call.1} parent=5 // pred_region
        // Predicated region
        $region41: #{tpu_custom_call.1} parent=39 // pred_check
          %p245 = pneg %p48
        $region42: #{tpu_custom_call.1} parent=39 // pred_check_branch
          %247 = sbr.rel (%p245) target = $region44
        $region43: #{tpu_custom_call.1} parent=39 // pred_region
          %p248 = scmp.lt.s32.totalorder %s23, 1
          %s249 = scalar_select %p248, %s23, 1
          %s250 = smul.addr %s249, 63
          %s251 = smul.addr %s250, 8
          %s252 = scalar_lea.vmem %s0, %s251
        $region44: #{tpu_custom_call.1} parent=39 // pred_fallthru
          _
      $region40: #{tpu_custom_call.1} parent=5 // pred_fallthru
        _
      %p253 = scmp.le.s32.totalorder 1, %s16
      %p254 = scmp.lt.s32.totalorder %s16, 5
      %p255 = pnand %p253, %p254
      %p256 = pneg %p255
      // Predicated region
      $region45: #{tpu_custom_call.1} parent=5 // pred_check
        _
      $region46: #{tpu_custom_call.1} parent=5 // pred_check_branch
        %258 = sbr.rel (%p255) target = $region48
      $region47: #{tpu_custom_call.1} parent=5 // pred_region
        %s259 = ssub.s32 %s16, 1
        %p260 = scmp.lt.s32.totalorder %s25, 1
        %s261 = scalar_select %p260, %s25, 1
        %s262 = smul.addr %s261, 63
        %s263 = smul.addr %s262, 8
        %s264 = scalar_lea.vmem %s0, %s263
        %p265 = pneg %p54
        %p266 = pneg %p51
        %p267 = pneg %p75
        %p268 = pneg %p72
        %p269 = pneg %p96
        %p270 = pneg %p93
        %p271 = pneg %p117
        %p272 = pneg %p114
        %p273 = pneg %p138
        %p274 = pneg %p135
        %p275 = pneg %p159
        %p276 = pneg %p156
        %p277 = pneg %p180
        %p278 = pneg %p177
        %p279 = pneg %p208
        %p280 = pneg %p205
        %s281 = sand.u32 %s195, 1
        %s282 = scalar_lea.sflag [#allocation4], %s281
        %s283 = sand.u32 %s195, 1
        %s284 = smul.addr %s283, 32
        %s285 = scalar_lea.vmem [#allocation3], %s284
        %p286 = scmp.lt.s32.totalorder %s25, 1
        %s287 = scalar_select %p286, %s25, 1
        %s288 = smul.addr %s287, 63
        %s289 = smul.addr %s288, 8
        %s290 = scalar_lea.vmem %s0, %s289
        %s291 = smul.u32 4, %s26
        %s293 = smul.u32 %s26, 8
        %s294 = smul.u32 %s293, 24
        %s295 = scalar_lea.vmem %s290, %s294
        %v296 = vld [vmem:[%s295] ss:$2 sm:$0xff]
        %s297 = scalar_lea.vmem %s295, 48
        %v298 = vld [vmem:[%s297] ss:$2 sm:$0xff]
        %s299 = scalar_lea.vmem %s295, 96
        %v300 = vld [vmem:[%s299] ss:$2 sm:$0xff]
        %s301 = scalar_lea.vmem %s295, 144
        %v302 = vld [vmem:[%s301] ss:$2 sm:$0xff]
        %s303 = scalar_lea.vmem %s295, 192
        %v304 = vld [vmem:[%s303] ss:$2 sm:$0xff]
        %s305 = scalar_lea.vmem %s295, 240
        %v306 = vld [vmem:[%s305] ss:$2 sm:$0xff]
        %s307 = scalar_lea.vmem %s295, 1
        %v308 = vld [vmem:[%s307] ss:$2 sm:$0xff]
        %s309 = scalar_lea.vmem %s295, 49
        %v310 = vld [vmem:[%s309] ss:$2 sm:$0xff]
        %s311 = scalar_lea.vmem %s295, 97
        %v312 = vld [vmem:[%s311] ss:$2 sm:$0xff]
        %s313 = scalar_lea.vmem %s295, 145
        %v314 = vld [vmem:[%s313] ss:$2 sm:$0xff]
        %s315 = scalar_lea.vmem %s295, 193
        %v316 = vld [vmem:[%s315] ss:$2 sm:$0xff]
        %s317 = scalar_lea.vmem %s295, 241
        %v318 = vld [vmem:[%s317] ss:$2 sm:$0xff]
        %s319 = scalar_lea.vmem %s295, 2
        %v320 = vld [vmem:[%s319] ss:$2 sm:$0xff]
        %s321 = scalar_lea.vmem %s295, 50
        %v322 = vld [vmem:[%s321] ss:$2 sm:$0xff]
        %s323 = scalar_lea.vmem %s295, 98
        %v324 = vld [vmem:[%s323] ss:$2 sm:$0xff]
        %s325 = scalar_lea.vmem %s295, 146
        %v326 = vld [vmem:[%s325] ss:$2 sm:$0xff]
        %s327 = scalar_lea.vmem %s295, 194
        %v328 = vld [vmem:[%s327] ss:$2 sm:$0xff]
        %s329 = scalar_lea.vmem %s295, 242
        %v330 = vld [vmem:[%s329] ss:$2 sm:$0xff]
        %v331 = vpack.c.bf16 %v298, %v296
        %v332 = vpack.c.bf16 %v310, %v308
        %v333 = vpack.c.bf16 %v322, %v320
        %v334 = vpack.c.bf16 %v302, %v300
        %v335 = vpack.c.bf16 %v314, %v312
        %v336 = vpack.c.bf16 %v326, %v324
        %v337 = vpack.c.bf16 %v306, %v304
        %v338 = vpack.c.bf16 %v318, %v316
        %v339 = vpack.c.bf16 %v330, %v328
        %v340 = vld [vmem:[%s1] sm:$0xf]
        %v341 = vld [vmem:[%s1 + $0x4] sm:$0xf]
        %v342 = vld [vmem:[%s1 + $0x8] sm:$0xf]
        %v343 = vld [vmem:[%s1 + $0xc] sm:$0xf]
        %v344 = vld [vmem:[%s1 + $0x10] sm:$0xf]
        %v345 = vld [vmem:[%s1 + $0x14] sm:$0xf]
        %v346 = vld [vmem:[%s1 + $0x18] sm:$0xf]
        %v347 = vld [vmem:[%s1 + $0x1c] sm:$0xf]
        %v348 = vld [vmem:[%s1 + $0x20] sm:$0xf]
        %v349 = vld [vmem:[%s1 + $0x24] sm:$0xf]
        %v350 = vld [vmem:[%s1 + $0x28] sm:$0xf]
        %v351 = vld [vmem:[%s1 + $0x2c] sm:$0xf]
        %v352 = vld [vmem:[%s1 + $0x30] sm:$0xf]
        %v353 = vld [vmem:[%s1 + $0x34] sm:$0xf]
        %v354 = vld [vmem:[%s1 + $0x38] sm:$0xf]
        %v355 = vld [vmem:[%s1 + $0x3c] sm:$0xf]
        %v356 = vld [vmem:[%s1 + $0x40] sm:$0xf]
        %v357 = vld [vmem:[%s1 + $0x44] sm:$0xf]
        %v358 = vld [vmem:[%s1 + $0x48] sm:$0xf]
        %v359 = vld [vmem:[%s1 + $0x4c] sm:$0xf]
        %v360 = vld [vmem:[%s1 + $0x50] sm:$0xf]
        %v361 = vld [vmem:[%s1 + $0x54] sm:$0xf]
        %v362 = vld [vmem:[%s1 + $0x58] sm:$0xf]
        %v363 = vld [vmem:[%s1 + $0x5c] sm:$0xf]
        %v364 = vld [vmem:[%s1 + $0x60] sm:$0xf]
        %v365 = vld [vmem:[%s1 + $0x64] sm:$0xf]
        %v366 = vld [vmem:[%s1 + $0x68] sm:$0xf]
        %v367 = vld [vmem:[%s1 + $0x6c] sm:$0xf]
        %v368 = vld [vmem:[%s1 + $0x70] sm:$0xf]
        %v369 = vld [vmem:[%s1 + $0x74] sm:$0xf]
        %v370 = vld [vmem:[%s1 + $0x78] sm:$0xf]
        %v371 = vld [vmem:[%s1 + $0x7c] sm:$0xf]
        %v372 = vld [vmem:[%s1 + $0x80] sm:$0xf]
        %v373 = vld [vmem:[%s1 + $0x84] sm:$0xf]
        %v374 = vld [vmem:[%s1 + $0x88] sm:$0xf]
        %v375 = vld [vmem:[%s1 + $0x8c] sm:$0xf]
        %v376 = vld [vmem:[%s1 + $0x90] sm:$0xf]
        %v377 = vld [vmem:[%s1 + $0x94] sm:$0xf]
        %v378 = vld [vmem:[%s1 + $0x98] sm:$0xf]
        %v379 = vld [vmem:[%s1 + $0x9c] sm:$0xf]
        %v380 = vld [vmem:[%s1 + $0xa0] sm:$0xf]
        %v381 = vld [vmem:[%s1 + $0xa4] sm:$0xf]
        %v382 = vld [vmem:[%s1 + $0xa8] sm:$0xf]
        %v383 = vld [vmem:[%s1 + $0xac] sm:$0xf]
        %v384 = vld [vmem:[%s1 + $0xb0] sm:$0xf]
        %v385 = vld [vmem:[%s1 + $0xb4] sm:$0xf]
        %v386 = vld [vmem:[%s1 + $0xb8] sm:$0xf]
        %v387 = vld [vmem:[%s1 + $0xbc] sm:$0xf]
        %s388 = sadd.s32 %s293, 1
        %s389 = smul.u32 %s388, 24
        %s390 = scalar_lea.vmem %s290, %s389
        %v391 = vld [vmem:[%s390] ss:$2 sm:$0xff]
        %s392 = scalar_lea.vmem %s390, 48
        %v393 = vld [vmem:[%s392] ss:$2 sm:$0xff]
        %s394 = scalar_lea.vmem %s390, 96
        %v395 = vld [vmem:[%s394] ss:$2 sm:$0xff]
        %s396 = scalar_lea.vmem %s390, 144
        %v397 = vld [vmem:[%s396] ss:$2 sm:$0xff]
        %s398 = scalar_lea.vmem %s390, 192
        %v399 = vld [vmem:[%s398] ss:$2 sm:$0xff]
        %s400 = scalar_lea.vmem %s390, 240
        %v401 = vld [vmem:[%s400] ss:$2 sm:$0xff]
        %s402 = scalar_lea.vmem %s390, 1
        %v403 = vld [vmem:[%s402] ss:$2 sm:$0xff]
        %s404 = scalar_lea.vmem %s390, 49
        %v405 = vld [vmem:[%s404] ss:$2 sm:$0xff]
        %s406 = scalar_lea.vmem %s390, 97
        %v407 = vld [vmem:[%s406] ss:$2 sm:$0xff]
        %s408 = scalar_lea.vmem %s390, 145
        %v409 = vld [vmem:[%s408] ss:$2 sm:$0xff]
        %s410 = scalar_lea.vmem %s390, 193
        %v411 = vld [vmem:[%s410] ss:$2 sm:$0xff]
        %s412 = scalar_lea.vmem %s390, 241
        %v413 = vld [vmem:[%s412] ss:$2 sm:$0xff]
        %s414 = scalar_lea.vmem %s390, 2
        %v415 = vld [vmem:[%s414] ss:$2 sm:$0xff]
        %s416 = scalar_lea.vmem %s390, 50
        %v417 = vld [vmem:[%s416] ss:$2 sm:$0xff]
        %s418 = scalar_lea.vmem %s390, 98
        %v419 = vld [vmem:[%s418] ss:$2 sm:$0xff]
        %s420 = scalar_lea.vmem %s390, 146
        %v421 = vld [vmem:[%s420] ss:$2 sm:$0xff]
        %s422 = scalar_lea.vmem %s390, 194
        %v423 = vld [vmem:[%s422] ss:$2 sm:$0xff]
        %s424 = scalar_lea.vmem %s390, 242
        %v425 = vld [vmem:[%s424] ss:$2 sm:$0xff]
        %v426 = vpack.c.bf16 %v393, %v391
        %v427 = vpack.c.bf16 %v405, %v403
        %v428 = vpack.c.bf16 %v417, %v415
        %v429 = vpack.c.bf16 %v397, %v395
        %v430 = vpack.c.bf16 %v409, %v407
        %v431 = vpack.c.bf16 %v421, %v419
        %v432 = vpack.c.bf16 %v401, %v399
        %v433 = vpack.c.bf16 %v413, %v411
        %v434 = vpack.c.bf16 %v425, %v423
        %s435 = scalar_lea.vmem %s1, 192
        %v436 = vld [vmem:[%s435] sm:$0xf]
        %v437 = vld [vmem:[%s435 + $0x4] sm:$0xf]
        %v438 = vld [vmem:[%s435 + $0x8] sm:$0xf]
        %v439 = vld [vmem:[%s435 + $0xc] sm:$0xf]
        %v440 = vld [vmem:[%s435 + $0x10] sm:$0xf]
        %v441 = vld [vmem:[%s435 + $0x14] sm:$0xf]
        %v442 = vld [vmem:[%s435 + $0x18] sm:$0xf]
        %v443 = vld [vmem:[%s435 + $0x1c] sm:$0xf]
        %v444 = vld [vmem:[%s435 + $0x20] sm:$0xf]
        %v445 = vld [vmem:[%s435 + $0x24] sm:$0xf]
        %v446 = vld [vmem:[%s435 + $0x28] sm:$0xf]
        %v447 = vld [vmem:[%s435 + $0x2c] sm:$0xf]
        %v448 = vld [vmem:[%s435 + $0x30] sm:$0xf]
        %v449 = vld [vmem:[%s435 + $0x34] sm:$0xf]
        %v450 = vld [vmem:[%s435 + $0x38] sm:$0xf]
        %v451 = vld [vmem:[%s435 + $0x3c] sm:$0xf]
        %v452 = vld [vmem:[%s435 + $0x40] sm:$0xf]
        %v453 = vld [vmem:[%s435 + $0x44] sm:$0xf]
        %v454 = vld [vmem:[%s435 + $0x48] sm:$0xf]
        %v455 = vld [vmem:[%s435 + $0x4c] sm:$0xf]
        %v456 = vld [vmem:[%s435 + $0x50] sm:$0xf]
        %v457 = vld [vmem:[%s435 + $0x54] sm:$0xf]
        %v458 = vld [vmem:[%s435 + $0x58] sm:$0xf]
        %v459 = vld [vmem:[%s435 + $0x5c] sm:$0xf]
        %v460 = vld [vmem:[%s435 + $0x60] sm:$0xf]
        %v461 = vld [vmem:[%s435 + $0x64] sm:$0xf]
        %v462 = vld [vmem:[%s435 + $0x68] sm:$0xf]
        %v463 = vld [vmem:[%s435 + $0x6c] sm:$0xf]
        %v464 = vld [vmem:[%s435 + $0x70] sm:$0xf]
        %v465 = vld [vmem:[%s435 + $0x74] sm:$0xf]
        %v466 = vld [vmem:[%s435 + $0x78] sm:$0xf]
        %v467 = vld [vmem:[%s435 + $0x7c] sm:$0xf]
        %v468 = vld [vmem:[%s435 + $0x80] sm:$0xf]
        %v469 = vld [vmem:[%s435 + $0x84] sm:$0xf]
        %v470 = vld [vmem:[%s435 + $0x88] sm:$0xf]
        %v471 = vld [vmem:[%s435 + $0x8c] sm:$0xf]
        %v472 = vld [vmem:[%s435 + $0x90] sm:$0xf]
        %v473 = vld [vmem:[%s435 + $0x94] sm:$0xf]
        %v474 = vld [vmem:[%s435 + $0x98] sm:$0xf]
        %v475 = vld [vmem:[%s435 + $0x9c] sm:$0xf]
        %v476 = vld [vmem:[%s435 + $0xa0] sm:$0xf]
        %v477 = vld [vmem:[%s435 + $0xa4] sm:$0xf]
        %v478 = vld [vmem:[%s435 + $0xa8] sm:$0xf]
        %v479 = vld [vmem:[%s435 + $0xac] sm:$0xf]
        %v480 = vld [vmem:[%s435 + $0xb0] sm:$0xf]
        %v481 = vld [vmem:[%s435 + $0xb4] sm:$0xf]
        %v482 = vld [vmem:[%s435 + $0xb8] sm:$0xf]
        %v483 = vld [vmem:[%s435 + $0xbc] sm:$0xf]
        %v532 = vunpack.c.l.b16 %v436
        %v533 = vunpack.c.l.b16 %v437
        %v534 = vunpack.c.l.b16 %v438
        %v535 = vunpack.c.l.b16 %v439
        %v536 = vunpack.c.l.b16 %v440
        %v537 = vunpack.c.l.b16 %v441
        %v538 = vunpack.c.l.b16 %v442
        %v539 = vunpack.c.l.b16 %v443
        %v540 = vunpack.c.l.b16 %v444
        %v541 = vunpack.c.l.b16 %v445
        %v542 = vunpack.c.l.b16 %v446
        %v543 = vunpack.c.l.b16 %v447
        %v544 = vunpack.c.l.b16 %v448
        %v545 = vunpack.c.l.b16 %v449
        %v546 = vunpack.c.l.b16 %v450
        %v547 = vunpack.c.l.b16 %v451
        %v548 = vunpack.c.l.b16 %v452
        %v549 = vunpack.c.l.b16 %v453
        %v550 = vunpack.c.l.b16 %v454
        %v551 = vunpack.c.l.b16 %v455
        %v552 = vunpack.c.l.b16 %v456
        %v553 = vunpack.c.l.b16 %v457
        %v554 = vunpack.c.l.b16 %v458
        %v555 = vunpack.c.l.b16 %v459
        %v556 = vunpack.c.l.b16 %v460
        %v557 = vunpack.c.l.b16 %v461
        %v558 = vunpack.c.l.b16 %v462
        %v559 = vunpack.c.l.b16 %v463
        %v560 = vunpack.c.l.b16 %v464
        %v561 = vunpack.c.l.b16 %v465
        %v562 = vunpack.c.l.b16 %v466
        %v563 = vunpack.c.l.b16 %v467
        %v564 = vunpack.c.l.b16 %v468
        %v565 = vunpack.c.l.b16 %v469
        %v566 = vunpack.c.l.b16 %v470
        %v567 = vunpack.c.l.b16 %v471
        %v568 = vunpack.c.l.b16 %v472
        %v569 = vunpack.c.l.b16 %v473
        %v570 = vunpack.c.l.b16 %v474
        %v571 = vunpack.c.l.b16 %v475
        %v572 = vunpack.c.l.b16 %v476
        %v573 = vunpack.c.l.b16 %v477
        %v574 = vunpack.c.l.b16 %v478
        %v575 = vunpack.c.l.b16 %v479
        %v576 = vunpack.c.l.b16 %v480
        %v577 = vunpack.c.l.b16 %v481
        %v578 = vunpack.c.l.b16 %v482
        %v579 = vunpack.c.l.b16 %v483
        %v580 = vpack.c.b16 %v533, %v532
        %v581 = vpack.c.b16 %v535, %v534
        %v582 = vpack.c.b16 %v537, %v536
        %v583 = vpack.c.b16 %v539, %v538
        %v584 = vpack.c.b16 %v541, %v540
        %v585 = vpack.c.b16 %v543, %v542
        %v586 = vpack.c.b16 %v545, %v544
        %v587 = vpack.c.b16 %v547, %v546
        %v588 = vpack.c.b16 %v549, %v548
        %v589 = vpack.c.b16 %v551, %v550
        %v590 = vpack.c.b16 %v553, %v552
        %v591 = vpack.c.b16 %v555, %v554
        %v592 = vpack.c.b16 %v557, %v556
        %v593 = vpack.c.b16 %v559, %v558
        %v594 = vpack.c.b16 %v561, %v560
        %v595 = vpack.c.b16 %v563, %v562
        %v596 = vpack.c.b16 %v565, %v564
        %v597 = vpack.c.b16 %v567, %v566
        %v598 = vpack.c.b16 %v569, %v568
        %v599 = vpack.c.b16 %v571, %v570
        %v600 = vpack.c.b16 %v573, %v572
        %v601 = vpack.c.b16 %v575, %v574
        %v602 = vpack.c.b16 %v577, %v576
        %v603 = vpack.c.b16 %v579, %v578
        %628 = vmatprep.subr.bf16.mxu0 0
        %629 = vmatpush1.bf16.msra.mxu0 %v587
        %630 = vmatprep.subr.bf16.mxu0 0
        %631 = vmatpush1.bf16.msra.mxu0 %v586
        %632 = vmatprep.subr.bf16.mxu0 0
        %633 = vmatpush1.bf16.msra.mxu0 %v585
        %634 = vmatprep.subr.bf16.mxu0 0
        %635 = vmatpush1.bf16.msra.mxu0 %v584
        %636 = vmatprep.subr.bf16.mxu0 0
        %637 = vmatpush1.bf16.msra.mxu0 %v583
        %638 = vmatprep.subr.bf16.mxu0 0
        %639 = vmatpush1.bf16.msra.mxu0 %v582
        %640 = vmatprep.subr.bf16.mxu0 0
        %641 = vmatpush1.bf16.msra.mxu0 %v581
        %642 = vmatprep.subr.bf16.mxu0 0
        %643 = vmatpush1.bf16.msra.mxu0 %v580
        %644 = vmatprep.subr.bf16.mxu0 0
        %645 = vmatpush2.bf16.msra.mxu0 %v595
        %646 = vmatprep.subr.bf16.mxu0 0
        %647 = vmatpush2.bf16.msra.mxu0 %v594
        %648 = vmatprep.subr.bf16.mxu0 0
        %649 = vmatpush2.bf16.msra.mxu0 %v593
        %650 = vmatprep.subr.bf16.mxu0 0
        %651 = vmatpush2.bf16.msra.mxu0 %v592
        %652 = vmatprep.subr.bf16.mxu0 0
        %653 = vmatpush2.bf16.msra.mxu0 %v591
        %654 = vmatprep.subr.bf16.mxu0 0
        %655 = vmatpush2.bf16.msra.mxu0 %v590
        %656 = vmatprep.subr.bf16.mxu0 0
        %657 = vmatpush2.bf16.msra.mxu0 %v589
        %658 = vmatprep.subr.bf16.mxu0 0
        %659 = vmatpush2.bf16.msra.mxu0 %v588
        %660 = vmatprep.mubr.bf16.mxu0 %v427
        %661 = vmatmul.mubr.bf16.gmra.mxu0 %v426
        %v662 = vpop.f32.mrf.mxu0
        %v663 = vadd.f32 0.0, %v662
        %v664 = vpop.f32.mrf.mxu0
        %v665 = vpop.f32.mrf.mxu0
        %v666 = vadd.f32 0.0, %v665
        %v667 = vpop.f32.mrf.mxu0
        %668 = vmatprep.mubr.bf16.mxu0 %v430
        %669 = vmatmul.mubr.bf16.gmra.mxu0 %v429
        %v670 = vpop.f32.mrf.mxu0
        %v671 = vadd.f32 0.0, %v670
        %v672 = vpop.f32.mrf.mxu0
        %v673 = vpop.f32.mrf.mxu0
        %v674 = vadd.f32 0.0, %v673
        %v675 = vpop.f32.mrf.mxu0
        %676 = vmatprep.mubr.bf16.mxu0 %v433
        %677 = vmatmul.mubr.bf16.gmra.mxu0 %v432
        %v678 = vpop.f32.mrf.mxu0
        %v679 = vadd.f32 0.0, %v678
        %v680 = vpop.f32.mrf.mxu0
        %v681 = vpop.f32.mrf.mxu0
        %v682 = vadd.f32 0.0, %v681
        %v683 = vpop.f32.mrf.mxu0
        %684 = vdwg.mxu0
        %685 = vmatprep.subr.bf16.mxu0 0
        %686 = vmatpush1.bf16.msra.mxu0 %v603
        %687 = vmatprep.subr.bf16.mxu0 0
        %688 = vmatpush1.bf16.msra.mxu0 %v602
        %689 = vmatprep.subr.bf16.mxu0 0
        %690 = vmatpush1.bf16.msra.mxu0 %v601
        %691 = vmatprep.subr.bf16.mxu0 0
        %692 = vmatpush1.bf16.msra.mxu0 %v600
        %693 = vmatprep.subr.bf16.mxu0 0
        %694 = vmatpush1.bf16.msra.mxu0 %v599
        %695 = vmatprep.subr.bf16.mxu0 0
        %696 = vmatpush1.bf16.msra.mxu0 %v598
        %697 = vmatprep.subr.bf16.mxu0 0
        %698 = vmatpush1.bf16.msra.mxu0 %v597
        %699 = vmatprep.subr.bf16.mxu0 0
        %700 = vmatpush1.bf16.msra.mxu0 %v596
        %701 = vmatprep.subr.bf16.mxu0 0
        %702 = vmatpush2.bf16.msra.mxu0 0
        %703 = vmatprep.subr.bf16.mxu0 0
        %704 = vmatpush2.bf16.msra.mxu0 0
        %705 = vmatprep.subr.bf16.mxu0 0
        %706 = vmatpush2.bf16.msra.mxu0 0
        %707 = vmatprep.subr.bf16.mxu0 0
        %708 = vmatpush2.bf16.msra.mxu0 0
        %709 = vmatprep.subr.bf16.mxu0 0
        %710 = vmatpush2.bf16.msra.mxu0 0
        %711 = vmatprep.subr.bf16.mxu0 0
        %712 = vmatpush2.bf16.msra.mxu0 0
        %713 = vmatprep.subr.bf16.mxu0 0
        %714 = vmatpush2.bf16.msra.mxu0 0
        %715 = vmatprep.subr.bf16.mxu0 0
        %716 = vmatpush2.bf16.msra.mxu0 0
        %717 = vmatprep.mubr.bf16.mxu0 0
        %718 = vmatmul.mubr.bf16.gmra.mxu0 %v428
        %v719 = vpop.f32.mrf.mxu0
        %v720 = vadd.f32 %v663, %v719
        %v721 = vpop.f32.mrf.mxu0
        %v722 = vpop.f32.mrf.mxu0
        %v723 = vadd.f32 %v666, %v722
        %v724 = vpop.f32.mrf.mxu0
        %725 = vmatprep.mubr.bf16.mxu0 0
        %726 = vmatmul.mubr.bf16.gmra.mxu0 %v431
        %v727 = vpop.f32.mrf.mxu0
        %v728 = vadd.f32 %v671, %v727
        %v729 = vpop.f32.mrf.mxu0
        %v730 = vpop.f32.mrf.mxu0
        %v731 = vadd.f32 %v674, %v730
        %v732 = vpop.f32.mrf.mxu0
        %733 = vmatprep.mubr.bf16.mxu0 0
        %734 = vmatmul.mubr.bf16.gmra.mxu0 %v434
        %v735 = vpop.f32.mrf.mxu0
        %v736 = vadd.f32 %v679, %v735
        %v737 = vpop.f32.mrf.mxu0
        %v738 = vpop.f32.mrf.mxu0
        %v739 = vadd.f32 %v682, %v738
        %v740 = vpop.f32.mrf.mxu0
        %741 = vdwg.mxu0
        %v790 = vunpack.c.l.b16 %v340
        %v791 = vunpack.c.l.b16 %v341
        %v792 = vunpack.c.l.b16 %v342
        %v793 = vunpack.c.l.b16 %v343
        %v794 = vunpack.c.l.b16 %v344
        %v795 = vunpack.c.l.b16 %v345
        %v796 = vunpack.c.l.b16 %v346
        %v797 = vunpack.c.l.b16 %v347
        %v798 = vunpack.c.l.b16 %v348
        %v799 = vunpack.c.l.b16 %v349
        %v800 = vunpack.c.l.b16 %v350
        %v801 = vunpack.c.l.b16 %v351
        %v802 = vunpack.c.l.b16 %v352
        %v803 = vunpack.c.l.b16 %v353
        %v804 = vunpack.c.l.b16 %v354
        %v805 = vunpack.c.l.b16 %v355
        %v806 = vunpack.c.l.b16 %v356
        %v807 = vunpack.c.l.b16 %v357
        %v808 = vunpack.c.l.b16 %v358
        %v809 = vunpack.c.l.b16 %v359
        %v810 = vunpack.c.l.b16 %v360
        %v811 = vunpack.c.l.b16 %v361
        %v812 = vunpack.c.l.b16 %v362
        %v813 = vunpack.c.l.b16 %v363
        %v814 = vunpack.c.l.b16 %v364
        %v815 = vunpack.c.l.b16 %v365
        %v816 = vunpack.c.l.b16 %v366
        %v817 = vunpack.c.l.b16 %v367
        %v818 = vunpack.c.l.b16 %v368
        %v819 = vunpack.c.l.b16 %v369
        %v820 = vunpack.c.l.b16 %v370
        %v821 = vunpack.c.l.b16 %v371
        %v822 = vunpack.c.l.b16 %v372
        %v823 = vunpack.c.l.b16 %v373
        %v824 = vunpack.c.l.b16 %v374
        %v825 = vunpack.c.l.b16 %v375
        %v826 = vunpack.c.l.b16 %v376
        %v827 = vunpack.c.l.b16 %v377
        %v828 = vunpack.c.l.b16 %v378
        %v829 = vunpack.c.l.b16 %v379
        %v830 = vunpack.c.l.b16 %v380
        %v831 = vunpack.c.l.b16 %v381
        %v832 = vunpack.c.l.b16 %v382
        %v833 = vunpack.c.l.b16 %v383
        %v834 = vunpack.c.l.b16 %v384
        %v835 = vunpack.c.l.b16 %v385
        %v836 = vunpack.c.l.b16 %v386
        %v837 = vunpack.c.l.b16 %v387
        %v838 = vpack.c.b16 %v791, %v790
        %v839 = vpack.c.b16 %v793, %v792
        %v840 = vpack.c.b16 %v795, %v794
        %v841 = vpack.c.b16 %v797, %v796
        %v842 = vpack.c.b16 %v799, %v798
        %v843 = vpack.c.b16 %v801, %v800
        %v844 = vpack.c.b16 %v803, %v802
        %v845 = vpack.c.b16 %v805, %v804
        %v846 = vpack.c.b16 %v807, %v806
        %v847 = vpack.c.b16 %v809, %v808
        %v848 = vpack.c.b16 %v811, %v810
        %v849 = vpack.c.b16 %v813, %v812
        %v850 = vpack.c.b16 %v815, %v814
        %v851 = vpack.c.b16 %v817, %v816
        %v852 = vpack.c.b16 %v819, %v818
        %v853 = vpack.c.b16 %v821, %v820
        %v854 = vpack.c.b16 %v823, %v822
        %v855 = vpack.c.b16 %v825, %v824
        %v856 = vpack.c.b16 %v827, %v826
        %v857 = vpack.c.b16 %v829, %v828
        %v858 = vpack.c.b16 %v831, %v830
        %v859 = vpack.c.b16 %v833, %v832
        %v860 = vpack.c.b16 %v835, %v834
        %v861 = vpack.c.b16 %v837, %v836
        %886 = vmatprep.subr.bf16.mxu0 0
        %887 = vmatpush1.bf16.msra.mxu0 %v845
        %888 = vmatprep.subr.bf16.mxu0 0
        %889 = vmatpush1.bf16.msra.mxu0 %v844
        %890 = vmatprep.subr.bf16.mxu0 0
        %891 = vmatpush1.bf16.msra.mxu0 %v843
        %892 = vmatprep.subr.bf16.mxu0 0
        %893 = vmatpush1.bf16.msra.mxu0 %v842
        %894 = vmatprep.subr.bf16.mxu0 0
        %895 = vmatpush1.bf16.msra.mxu0 %v841
        %896 = vmatprep.subr.bf16.mxu0 0
        %897 = vmatpush1.bf16.msra.mxu0 %v840
        %898 = vmatprep.subr.bf16.mxu0 0
        %899 = vmatpush1.bf16.msra.mxu0 %v839
        %900 = vmatprep.subr.bf16.mxu0 0
        %901 = vmatpush1.bf16.msra.mxu0 %v838
        %902 = vmatprep.subr.bf16.mxu0 0
        %903 = vmatpush2.bf16.msra.mxu0 %v853
        %904 = vmatprep.subr.bf16.mxu0 0
        %905 = vmatpush2.bf16.msra.mxu0 %v852
        %906 = vmatprep.subr.bf16.mxu0 0
        %907 = vmatpush2.bf16.msra.mxu0 %v851
        %908 = vmatprep.subr.bf16.mxu0 0
        %909 = vmatpush2.bf16.msra.mxu0 %v850
        %910 = vmatprep.subr.bf16.mxu0 0
        %911 = vmatpush2.bf16.msra.mxu0 %v849
        %912 = vmatprep.subr.bf16.mxu0 0
        %913 = vmatpush2.bf16.msra.mxu0 %v848
        %914 = vmatprep.subr.bf16.mxu0 0
        %915 = vmatpush2.bf16.msra.mxu0 %v847
        %916 = vmatprep.subr.bf16.mxu0 0
        %917 = vmatpush2.bf16.msra.mxu0 %v846
        %918 = vmatprep.mubr.bf16.mxu0 %v332
        %919 = vmatmul.mubr.bf16.gmra.mxu0 %v331
        %v920 = vpop.f32.mrf.mxu0
        %v921 = vadd.f32 %v720, %v920
        %v922 = vpop.f32.mrf.mxu0
        %v923 = vpop.f32.mrf.mxu0
        %v924 = vadd.f32 %v723, %v923
        %v925 = vpop.f32.mrf.mxu0
        %926 = vmatprep.mubr.bf16.mxu0 %v335
        %927 = vmatmul.mubr.bf16.gmra.mxu0 %v334
        %v928 = vpop.f32.mrf.mxu0
        %v929 = vadd.f32 %v728, %v928
        %v930 = vpop.f32.mrf.mxu0
        %v931 = vpop.f32.mrf.mxu0
        %v932 = vadd.f32 %v731, %v931
        %v933 = vpop.f32.mrf.mxu0
        %934 = vmatprep.mubr.bf16.mxu0 %v338
        %935 = vmatmul.mubr.bf16.gmra.mxu0 %v337
        %v936 = vpop.f32.mrf.mxu0
        %v937 = vadd.f32 %v736, %v936
        %v938 = vpop.f32.mrf.mxu0
        %v939 = vpop.f32.mrf.mxu0
        %v940 = vadd.f32 %v739, %v939
        %v941 = vpop.f32.mrf.mxu0
        %942 = vdwg.mxu0
        %943 = vmatprep.subr.bf16.mxu0 0
        %944 = vmatpush1.bf16.msra.mxu0 %v861
        %945 = vmatprep.subr.bf16.mxu0 0
        %946 = vmatpush1.bf16.msra.mxu0 %v860
        %947 = vmatprep.subr.bf16.mxu0 0
        %948 = vmatpush1.bf16.msra.mxu0 %v859
        %949 = vmatprep.subr.bf16.mxu0 0
        %950 = vmatpush1.bf16.msra.mxu0 %v858
        %951 = vmatprep.subr.bf16.mxu0 0
        %952 = vmatpush1.bf16.msra.mxu0 %v857
        %953 = vmatprep.subr.bf16.mxu0 0
        %954 = vmatpush1.bf16.msra.mxu0 %v856
        %955 = vmatprep.subr.bf16.mxu0 0
        %956 = vmatpush1.bf16.msra.mxu0 %v855
        %957 = vmatprep.subr.bf16.mxu0 0
        %958 = vmatpush1.bf16.msra.mxu0 %v854
        %959 = vmatprep.subr.bf16.mxu0 0
        %960 = vmatpush2.bf16.msra.mxu0 0
        %961 = vmatprep.subr.bf16.mxu0 0
        %962 = vmatpush2.bf16.msra.mxu0 0
        %963 = vmatprep.subr.bf16.mxu0 0
        %964 = vmatpush2.bf16.msra.mxu0 0
        %965 = vmatprep.subr.bf16.mxu0 0
        %966 = vmatpush2.bf16.msra.mxu0 0
        %967 = vmatprep.subr.bf16.mxu0 0
        %968 = vmatpush2.bf16.msra.mxu0 0
        %969 = vmatprep.subr.bf16.mxu0 0
        %970 = vmatpush2.bf16.msra.mxu0 0
        %971 = vmatprep.subr.bf16.mxu0 0
        %972 = vmatpush2.bf16.msra.mxu0 0
        %973 = vmatprep.subr.bf16.mxu0 0
        %974 = vmatpush2.bf16.msra.mxu0 0
        %975 = vmatprep.mubr.bf16.mxu0 0
        %976 = vmatmul.mubr.bf16.gmra.mxu0 %v333
        %v977 = vpop.f32.mrf.mxu0
        %v978 = vadd.f32 %v921, %v977
        %v979 = vpop.f32.mrf.mxu0
        %v980 = vpop.f32.mrf.mxu0
        %v981 = vadd.f32 %v924, %v980
        %v982 = vpop.f32.mrf.mxu0
        %983 = vmatprep.mubr.bf16.mxu0 0
        %984 = vmatmul.mubr.bf16.gmra.mxu0 %v336
        %v985 = vpop.f32.mrf.mxu0
        %v986 = vadd.f32 %v929, %v985
        %v987 = vpop.f32.mrf.mxu0
        %v988 = vpop.f32.mrf.mxu0
        %v989 = vadd.f32 %v932, %v988
        %v990 = vpop.f32.mrf.mxu0
        %991 = vmatprep.mubr.bf16.mxu0 0
        %992 = vmatmul.mubr.bf16.gmra.mxu0 %v339
        %v993 = vpop.f32.mrf.mxu0
        %v994 = vadd.f32 %v937, %v993
        %v995 = vpop.f32.mrf.mxu0
        %v996 = vpop.f32.mrf.mxu0
        %v997 = vadd.f32 %v940, %v996
        %v998 = vpop.f32.mrf.mxu0
        %999 = vdwg.mxu0
        %s1000 = sadd.s32 %s293, 2
        %s1001 = smul.u32 %s1000, 24
        %s1002 = scalar_lea.vmem %s290, %s1001
        %v1003 = vld [vmem:[%s1002] ss:$2 sm:$0xff]
        %s1004 = scalar_lea.vmem %s1002, 48
        %v1005 = vld [vmem:[%s1004] ss:$2 sm:$0xff]
        %s1006 = scalar_lea.vmem %s1002, 96
        %v1007 = vld [vmem:[%s1006] ss:$2 sm:$0xff]
        %s1008 = scalar_lea.vmem %s1002, 144
        %v1009 = vld [vmem:[%s1008] ss:$2 sm:$0xff]
        %s1010 = scalar_lea.vmem %s1002, 192
        %v1011 = vld [vmem:[%s1010] ss:$2 sm:$0xff]
        %s1012 = scalar_lea.vmem %s1002, 240
        %v1013 = vld [vmem:[%s1012] ss:$2 sm:$0xff]
        %s1014 = scalar_lea.vmem %s1002, 1
        %v1015 = vld [vmem:[%s1014] ss:$2 sm:$0xff]
        %s1016 = scalar_lea.vmem %s1002, 49
        %v1017 = vld [vmem:[%s1016] ss:$2 sm:$0xff]
        %s1018 = scalar_lea.vmem %s1002, 97
        %v1019 = vld [vmem:[%s1018] ss:$2 sm:$0xff]
        %s1020 = scalar_lea.vmem %s1002, 145
        %v1021 = vld [vmem:[%s1020] ss:$2 sm:$0xff]
        %s1022 = scalar_lea.vmem %s1002, 193
        %v1023 = vld [vmem:[%s1022] ss:$2 sm:$0xff]
        %s1024 = scalar_lea.vmem %s1002, 241
        %v1025 = vld [vmem:[%s1024] ss:$2 sm:$0xff]
        %s1026 = scalar_lea.vmem %s1002, 2
        %v1027 = vld [vmem:[%s1026] ss:$2 sm:$0xff]
        %s1028 = scalar_lea.vmem %s1002, 50
        %v1029 = vld [vmem:[%s1028] ss:$2 sm:$0xff]
        %s1030 = scalar_lea.vmem %s1002, 98
        %v1031 = vld [vmem:[%s1030] ss:$2 sm:$0xff]
        %s1032 = scalar_lea.vmem %s1002, 146
        %v1033 = vld [vmem:[%s1032] ss:$2 sm:$0xff]
        %s1034 = scalar_lea.vmem %s1002, 194
        %v1035 = vld [vmem:[%s1034] ss:$2 sm:$0xff]
        %s1036 = scalar_lea.vmem %s1002, 242
        %v1037 = vld [vmem:[%s1036] ss:$2 sm:$0xff]
        %v1038 = vpack.c.bf16 %v1005, %v1003
        %v1039 = vpack.c.bf16 %v1017, %v1015
        %v1040 = vpack.c.bf16 %v1029, %v1027
        %v1041 = vpack.c.bf16 %v1009, %v1007
        %v1042 = vpack.c.bf16 %v1021, %v1019
        %v1043 = vpack.c.bf16 %v1033, %v1031
        %v1044 = vpack.c.bf16 %v1013, %v1011
        %v1045 = vpack.c.bf16 %v1025, %v1023
        %v1046 = vpack.c.bf16 %v1037, %v1035
        %s1047 = scalar_lea.vmem %s1, 384
        %v1048 = vld [vmem:[%s1047] sm:$0xf]
        %v1049 = vld [vmem:[%s1047 + $0x4] sm:$0xf]
        %v1050 = vld [vmem:[%s1047 + $0x8] sm:$0xf]
        %v1051 = vld [vmem:[%s1047 + $0xc] sm:$0xf]
        %v1052 = vld [vmem:[%s1047 + $0x10] sm:$0xf]
        %v1053 = vld [vmem:[%s1047 + $0x14] sm:$0xf]
        %v1054 = vld [vmem:[%s1047 + $0x18] sm:$0xf]
        %v1055 = vld [vmem:[%s1047 + $0x1c] sm:$0xf]
        %v1056 = vld [vmem:[%s1047 + $0x20] sm:$0xf]
        %v1057 = vld [vmem:[%s1047 + $0x24] sm:$0xf]
        %v1058 = vld [vmem:[%s1047 + $0x28] sm:$0xf]
        %v1059 = vld [vmem:[%s1047 + $0x2c] sm:$0xf]
        %v1060 = vld [vmem:[%s1047 + $0x30] sm:$0xf]
        %v1061 = vld [vmem:[%s1047 + $0x34] sm:$0xf]
        %v1062 = vld [vmem:[%s1047 + $0x38] sm:$0xf]
        %v1063 = vld [vmem:[%s1047 + $0x3c] sm:$0xf]
        %v1064 = vld [vmem:[%s1047 + $0x40] sm:$0xf]
        %v1065 = vld [vmem:[%s1047 + $0x44] sm:$0xf]
        %v1066 = vld [vmem:[%s1047 + $0x48] sm:$0xf]
        %v1067 = vld [vmem:[%s1047 + $0x4c] sm:$0xf]
        %v1068 = vld [vmem:[%s1047 + $0x50] sm:$0xf]
        %v1069 = vld [vmem:[%s1047 + $0x54] sm:$0xf]
        %v1070 = vld [vmem:[%s1047 + $0x58] sm:$0xf]
        %v1071 = vld [vmem:[%s1047 + $0x5c] sm:$0xf]
        %v1072 = vld [vmem:[%s1047 + $0x60] sm:$0xf]
        %v1073 = vld [vmem:[%s1047 + $0x64] sm:$0xf]
        %v1074 = vld [vmem:[%s1047 + $0x68] sm:$0xf]
        %v1075 = vld [vmem:[%s1047 + $0x6c] sm:$0xf]
        %v1076 = vld [vmem:[%s1047 + $0x70] sm:$0xf]
        %v1077 = vld [vmem:[%s1047 + $0x74] sm:$0xf]
        %v1078 = vld [vmem:[%s1047 + $0x78] sm:$0xf]
        %v1079 = vld [vmem:[%s1047 + $0x7c] sm:$0xf]
        %v1080 = vld [vmem:[%s1047 + $0x80] sm:$0xf]
        %v1081 = vld [vmem:[%s1047 + $0x84] sm:$0xf]
        %v1082 = vld [vmem:[%s1047 + $0x88] sm:$0xf]
        %v1083 = vld [vmem:[%s1047 + $0x8c] sm:$0xf]
        %v1084 = vld [vmem:[%s1047 + $0x90] sm:$0xf]
        %v1085 = vld [vmem:[%s1047 + $0x94] sm:$0xf]
        %v1086 = vld [vmem:[%s1047 + $0x98] sm:$0xf]
        %v1087 = vld [vmem:[%s1047 + $0x9c] sm:$0xf]
        %v1088 = vld [vmem:[%s1047 + $0xa0] sm:$0xf]
        %v1089 = vld [vmem:[%s1047 + $0xa4] sm:$0xf]
        %v1090 = vld [vmem:[%s1047 + $0xa8] sm:$0xf]
        %v1091 = vld [vmem:[%s1047 + $0xac] sm:$0xf]
        %v1092 = vld [vmem:[%s1047 + $0xb0] sm:$0xf]
        %v1093 = vld [vmem:[%s1047 + $0xb4] sm:$0xf]
        %v1094 = vld [vmem:[%s1047 + $0xb8] sm:$0xf]
        %v1095 = vld [vmem:[%s1047 + $0xbc] sm:$0xf]
        %v1144 = vunpack.c.l.b16 %v1048
        %v1145 = vunpack.c.l.b16 %v1049
        %v1146 = vunpack.c.l.b16 %v1050
        %v1147 = vunpack.c.l.b16 %v1051
        %v1148 = vunpack.c.l.b16 %v1052
        %v1149 = vunpack.c.l.b16 %v1053
        %v1150 = vunpack.c.l.b16 %v1054
        %v1151 = vunpack.c.l.b16 %v1055
        %v1152 = vunpack.c.l.b16 %v1056
        %v1153 = vunpack.c.l.b16 %v1057
        %v1154 = vunpack.c.l.b16 %v1058
        %v1155 = vunpack.c.l.b16 %v1059
        %v1156 = vunpack.c.l.b16 %v1060
        %v1157 = vunpack.c.l.b16 %v1061
        %v1158 = vunpack.c.l.b16 %v1062
        %v1159 = vunpack.c.l.b16 %v1063
        %v1160 = vunpack.c.l.b16 %v1064
        %v1161 = vunpack.c.l.b16 %v1065
        %v1162 = vunpack.c.l.b16 %v1066
        %v1163 = vunpack.c.l.b16 %v1067
        %v1164 = vunpack.c.l.b16 %v1068
        %v1165 = vunpack.c.l.b16 %v1069
        %v1166 = vunpack.c.l.b16 %v1070
        %v1167 = vunpack.c.l.b16 %v1071
        %v1168 = vunpack.c.l.b16 %v1072
        %v1169 = vunpack.c.l.b16 %v1073
        %v1170 = vunpack.c.l.b16 %v1074
        %v1171 = vunpack.c.l.b16 %v1075
        %v1172 = vunpack.c.l.b16 %v1076
        %v1173 = vunpack.c.l.b16 %v1077
        %v1174 = vunpack.c.l.b16 %v1078
        %v1175 = vunpack.c.l.b16 %v1079
        %v1176 = vunpack.c.l.b16 %v1080
        %v1177 = vunpack.c.l.b16 %v1081
        %v1178 = vunpack.c.l.b16 %v1082
        %v1179 = vunpack.c.l.b16 %v1083
        %v1180 = vunpack.c.l.b16 %v1084
        %v1181 = vunpack.c.l.b16 %v1085
        %v1182 = vunpack.c.l.b16 %v1086
        %v1183 = vunpack.c.l.b16 %v1087
        %v1184 = vunpack.c.l.b16 %v1088
        %v1185 = vunpack.c.l.b16 %v1089
        %v1186 = vunpack.c.l.b16 %v1090
        %v1187 = vunpack.c.l.b16 %v1091
        %v1188 = vunpack.c.l.b16 %v1092
        %v1189 = vunpack.c.l.b16 %v1093
        %v1190 = vunpack.c.l.b16 %v1094
        %v1191 = vunpack.c.l.b16 %v1095
        %v1192 = vpack.c.b16 %v1145, %v1144
        %v1193 = vpack.c.b16 %v1147, %v1146
        %v1194 = vpack.c.b16 %v1149, %v1148
        %v1195 = vpack.c.b16 %v1151, %v1150
        %v1196 = vpack.c.b16 %v1153, %v1152
        %v1197 = vpack.c.b16 %v1155, %v1154
        %v1198 = vpack.c.b16 %v1157, %v1156
        %v1199 = vpack.c.b16 %v1159, %v1158
        %v1200 = vpack.c.b16 %v1161, %v1160
        %v1201 = vpack.c.b16 %v1163, %v1162
        %v1202 = vpack.c.b16 %v1165, %v1164
        %v1203 = vpack.c.b16 %v1167, %v1166
        %v1204 = vpack.c.b16 %v1169, %v1168
        %v1205 = vpack.c.b16 %v1171, %v1170
        %v1206 = vpack.c.b16 %v1173, %v1172
        %v1207 = vpack.c.b16 %v1175, %v1174
        %v1208 = vpack.c.b16 %v1177, %v1176
        %v1209 = vpack.c.b16 %v1179, %v1178
        %v1210 = vpack.c.b16 %v1181, %v1180
        %v1211 = vpack.c.b16 %v1183, %v1182
        %v1212 = vpack.c.b16 %v1185, %v1184
        %v1213 = vpack.c.b16 %v1187, %v1186
        %v1214 = vpack.c.b16 %v1189, %v1188
        %v1215 = vpack.c.b16 %v1191, %v1190
        %1240 = vmatprep.subr.bf16.mxu0 0
        %1241 = vmatpush1.bf16.msra.mxu0 %v1199
        %1242 = vmatprep.subr.bf16.mxu0 0
        %1243 = vmatpush1.bf16.msra.mxu0 %v1198
        %1244 = vmatprep.subr.bf16.mxu0 0
        %1245 = vmatpush1.bf16.msra.mxu0 %v1197
        %1246 = vmatprep.subr.bf16.mxu0 0
        %1247 = vmatpush1.bf16.msra.mxu0 %v1196
        %1248 = vmatprep.subr.bf16.mxu0 0
        %1249 = vmatpush1.bf16.msra.mxu0 %v1195
        %1250 = vmatprep.subr.bf16.mxu0 0
        %1251 = vmatpush1.bf16.msra.mxu0 %v1194
        %1252 = vmatprep.subr.bf16.mxu0 0
        %1253 = vmatpush1.bf16.msra.mxu0 %v1193
        %1254 = vmatprep.subr.bf16.mxu0 0
        %1255 = vmatpush1.bf16.msra.mxu0 %v1192
        %1256 = vmatprep.subr.bf16.mxu0 0
        %1257 = vmatpush2.bf16.msra.mxu0 %v1207
        %1258 = vmatprep.subr.bf16.mxu0 0
        %1259 = vmatpush2.bf16.msra.mxu0 %v1206
        %1260 = vmatprep.subr.bf16.mxu0 0
        %1261 = vmatpush2.bf16.msra.mxu0 %v1205
        %1262 = vmatprep.subr.bf16.mxu0 0
        %1263 = vmatpush2.bf16.msra.mxu0 %v1204
        %1264 = vmatprep.subr.bf16.mxu0 0
        %1265 = vmatpush2.bf16.msra.mxu0 %v1203
        %1266 = vmatprep.subr.bf16.mxu0 0
        %1267 = vmatpush2.bf16.msra.mxu0 %v1202
        %1268 = vmatprep.subr.bf16.mxu0 0
        %1269 = vmatpush2.bf16.msra.mxu0 %v1201
        %1270 = vmatprep.subr.bf16.mxu0 0
        %1271 = vmatpush2.bf16.msra.mxu0 %v1200
        %1272 = vmatprep.mubr.bf16.mxu0 %v1039
        %1273 = vmatmul.mubr.bf16.gmra.mxu0 %v1038
        %v1274 = vpop.f32.mrf.mxu0
        %v1275 = vadd.f32 0.0, %v1274
        %v1276 = vpop.f32.mrf.mxu0
        %v1277 = vpop.f32.mrf.mxu0
        %v1278 = vadd.f32 0.0, %v1277
        %v1279 = vpop.f32.mrf.mxu0
        %1280 = vmatprep.mubr.bf16.mxu0 %v1042
        %1281 = vmatmul.mubr.bf16.gmra.mxu0 %v1041
        %v1282 = vpop.f32.mrf.mxu0
        %v1283 = vadd.f32 0.0, %v1282
        %v1284 = vpop.f32.mrf.mxu0
        %v1285 = vpop.f32.mrf.mxu0
        %v1286 = vadd.f32 0.0, %v1285
        %v1287 = vpop.f32.mrf.mxu0
        %1288 = vmatprep.mubr.bf16.mxu0 %v1045
        %1289 = vmatmul.mubr.bf16.gmra.mxu0 %v1044
        %v1290 = vpop.f32.mrf.mxu0
        %v1291 = vadd.f32 0.0, %v1290
        %v1292 = vpop.f32.mrf.mxu0
        %v1293 = vpop.f32.mrf.mxu0
        %v1294 = vadd.f32 0.0, %v1293
        %v1295 = vpop.f32.mrf.mxu0
        %1296 = vdwg.mxu0
        %1297 = vmatprep.subr.bf16.mxu0 0
        %1298 = vmatpush1.bf16.msra.mxu0 %v1215
        %1299 = vmatprep.subr.bf16.mxu0 0
        %1300 = vmatpush1.bf16.msra.mxu0 %v1214
        %1301 = vmatprep.subr.bf16.mxu0 0
        %1302 = vmatpush1.bf16.msra.mxu0 %v1213
        %1303 = vmatprep.subr.bf16.mxu0 0
        %1304 = vmatpush1.bf16.msra.mxu0 %v1212
        %1305 = vmatprep.subr.bf16.mxu0 0
        %1306 = vmatpush1.bf16.msra.mxu0 %v1211
        %1307 = vmatprep.subr.bf16.mxu0 0
        %1308 = vmatpush1.bf16.msra.mxu0 %v1210
        %1309 = vmatprep.subr.bf16.mxu0 0
        %1310 = vmatpush1.bf16.msra.mxu0 %v1209
        %1311 = vmatprep.subr.bf16.mxu0 0
        %1312 = vmatpush1.bf16.msra.mxu0 %v1208
        %1313 = vmatprep.subr.bf16.mxu0 0
        %1314 = vmatpush2.bf16.msra.mxu0 0
        %1315 = vmatprep.subr.bf16.mxu0 0
        %1316 = vmatpush2.bf16.msra.mxu0 0
        %1317 = vmatprep.subr.bf16.mxu0 0
        %1318 = vmatpush2.bf16.msra.mxu0 0
        %1319 = vmatprep.subr.bf16.mxu0 0
        %1320 = vmatpush2.bf16.msra.mxu0 0
        %1321 = vmatprep.subr.bf16.mxu0 0
        %1322 = vmatpush2.bf16.msra.mxu0 0
        %1323 = vmatprep.subr.bf16.mxu0 0
        %1324 = vmatpush2.bf16.msra.mxu0 0
        %1325 = vmatprep.subr.bf16.mxu0 0
        %1326 = vmatpush2.bf16.msra.mxu0 0
        %1327 = vmatprep.subr.bf16.mxu0 0
        %1328 = vmatpush2.bf16.msra.mxu0 0
        %1329 = vmatprep.mubr.bf16.mxu0 0
        %1330 = vmatmul.mubr.bf16.gmra.mxu0 %v1040
        %v1331 = vpop.f32.mrf.mxu0
        %v1332 = vadd.f32 %v1275, %v1331
        %v1333 = vpop.f32.mrf.mxu0
        %v1334 = vpop.f32.mrf.mxu0
        %v1335 = vadd.f32 %v1278, %v1334
        %v1336 = vpop.f32.mrf.mxu0
        %1337 = vmatprep.mubr.bf16.mxu0 0
        %1338 = vmatmul.mubr.bf16.gmra.mxu0 %v1043
        %v1339 = vpop.f32.mrf.mxu0
        %v1340 = vadd.f32 %v1283, %v1339
        %v1341 = vpop.f32.mrf.mxu0
        %v1342 = vpop.f32.mrf.mxu0
        %v1343 = vadd.f32 %v1286, %v1342
        %v1344 = vpop.f32.mrf.mxu0
        %1345 = vmatprep.mubr.bf16.mxu0 0
        %1346 = vmatmul.mubr.bf16.gmra.mxu0 %v1046
        %v1347 = vpop.f32.mrf.mxu0
        %v1348 = vadd.f32 %v1291, %v1347
        %v1349 = vpop.f32.mrf.mxu0
        %v1350 = vpop.f32.mrf.mxu0
        %v1351 = vadd.f32 %v1294, %v1350
        %v1352 = vpop.f32.mrf.mxu0
        %1353 = vdwg.mxu0
        %v1354 = vadd.f32 %v978, %v1332
        %v1355 = vadd.f32 %v981, %v1335
        %v1356 = vadd.f32 %v986, %v1340
        %v1357 = vadd.f32 %v989, %v1343
        %v1358 = vadd.f32 %v994, %v1348
        %v1359 = vadd.f32 %v997, %v1351
        %v1360 = vld [vmem:[%s2] sm:$0x1]
        %v1362 = vlaneseq
        %v1363 = vshrl.u32 %v1362, 7
        %v1364 = vsub.s32 0, %v1363
        %v1365 = vrot.slane %v1360, %v1364
        %v1367 = vadd.f32 %v1354, %v1365
        %v1368 = vadd.f32 %v1355, %v1365
        %v1369 = vadd.f32 %v1356, %v1365
        %v1370 = vadd.f32 %v1357, %v1365
        %v1371 = vadd.f32 %v1358, %v1365
        %v1372 = vadd.f32 %v1359, %v1365
        %v1373 = vmax.f32 %v1367, 0.0
        %v1374 = vmax.f32 %v1368, 0.0
        %v1375 = vmax.f32 %v1369, 0.0
        %v1376 = vmax.f32 %v1370, 0.0
        %v1377 = vmax.f32 %v1371, 0.0
        %v1378 = vmax.f32 %v1372, 0.0
        %s1379 = smul.u32 %s26, 4
        %s1380 = ssub.s32 %s1379, 1
        %v1381 = vstv %s1380
        %v1382 = vadd.s32 %v1381, 1
        %v1383 = vadd.s32 %v1381, 2
        %v1384 = vadd.s32 %v1381, 3
        %v1385 = vadd.s32 %v1381, 4
        %v1386 = vadd.s32 %v1381, 5
        %vm1387 = vcmp.ge.s32.totalorder %v1381, 0
        %vm1388 = vcmp.ge.s32.totalorder %v1382, 0
        %vm1389 = vcmp.ge.s32.totalorder %v1383, 0
        %vm1390 = vcmp.ge.s32.totalorder %v1384, 0
        %vm1391 = vcmp.ge.s32.totalorder %v1385, 0
        %vm1392 = vcmp.ge.s32.totalorder %v1386, 0
        %vm1393 = vcmp.lt.s32.totalorder %v1381, 8
        %vm1394 = vcmp.lt.s32.totalorder %v1382, 8
        %vm1395 = vcmp.lt.s32.totalorder %v1383, 8
        %vm1396 = vcmp.lt.s32.totalorder %v1384, 8
        %vm1397 = vcmp.lt.s32.totalorder %v1385, 8
        %vm1398 = vcmp.lt.s32.totalorder %v1386, 8
        %vm1399 = vmand %vm1387, %vm1393
        %vm1400 = vmand %vm1388, %vm1394
        %vm1401 = vmand %vm1389, %vm1395
        %vm1402 = vmand %vm1390, %vm1396
        %vm1403 = vmand %vm1391, %vm1397
        %vm1404 = vmand %vm1392, %vm1398
        %v1405 = vsel %vm1399, %v1373, 0.0
        %v1406 = vsel %vm1400, %v1374, 0.0
        %v1407 = vsel %vm1401, %v1375, 0.0
        %v1408 = vsel %vm1402, %v1376, 0.0
        %v1409 = vsel %vm1403, %v1377, 0.0
        %v1410 = vsel %vm1404, %v1378, 0.0
        %1411 = vst [vmem:[#allocation2 + $0x1] sm:$0xff] %v1405
        %1412 = vst [vmem:[#allocation2 + $0x11] sm:$0xff] %v1406
        %1413 = vst [vmem:[#allocation2 + $0x21] sm:$0xff] %v1407
        %1414 = vst [vmem:[#allocation2 + $0x31] sm:$0xff] %v1408
        %1415 = vst [vmem:[#allocation2 + $0x41] sm:$0xff] %v1409
        %1416 = vst [vmem:[#allocation2 + $0x51] sm:$0xff] %v1410
        %1417 = vst [vmem:[#allocation2] sm:$0x1] 0.0
        %1418 = vst [vmem:[#allocation2 + $0x10] sm:$0x1] 0.0
        %1419 = vst [vmem:[#allocation2 + $0x20] sm:$0x1] 0.0
        %1420 = vst [vmem:[#allocation2 + $0x30] sm:$0x1] 0.0
        %1421 = vst [vmem:[#allocation2 + $0x40] sm:$0x1] 0.0
        %1422 = vst [vmem:[#allocation2 + $0x50] sm:$0x1] 0.0
        %1423 = vst [vmem:[#allocation2 + $0x9] sm:$0x1] 0.0
        %1424 = vst [vmem:[#allocation2 + $0x19] sm:$0x1] 0.0
        %1425 = vst [vmem:[#allocation2 + $0x29] sm:$0x1] 0.0
        %1426 = vst [vmem:[#allocation2 + $0x39] sm:$0x1] 0.0
        %1427 = vst [vmem:[#allocation2 + $0x49] sm:$0x1] 0.0
        %1428 = vst [vmem:[#allocation2 + $0x59] sm:$0x1] 0.0
        %v1429 = vld [vmem:[#allocation2] sm:$0xff]
        %v1430 = vld [vmem:[#allocation2 + $0x10] sm:$0xff]
        %v1431 = vld [vmem:[#allocation2 + $0x20] sm:$0xff]
        %v1432 = vld [vmem:[#allocation2 + $0x30] sm:$0xff]
        %v1433 = vld [vmem:[#allocation2 + $0x1] sm:$0xff]
        %v1434 = vld [vmem:[#allocation2 + $0x11] sm:$0xff]
        %v1435 = vld [vmem:[#allocation2 + $0x21] sm:$0xff]
        %v1436 = vld [vmem:[#allocation2 + $0x31] sm:$0xff]
        %v1437 = vld [vmem:[#allocation2 + $0x2] sm:$0xff]
        %v1438 = vld [vmem:[#allocation2 + $0x12] sm:$0xff]
        %v1439 = vld [vmem:[#allocation2 + $0x22] sm:$0xff]
        %v1440 = vld [vmem:[#allocation2 + $0x32] sm:$0xff]
        %v1441 = vpack.c.bf16 %v1430, %v1429
        %v1442 = vpack.c.bf16 %v1434, %v1433
        %v1443 = vpack.c.bf16 %v1438, %v1437
        %v1444 = vpack.c.bf16 %v1432, %v1431
        %v1445 = vpack.c.bf16 %v1436, %v1435
        %v1446 = vpack.c.bf16 %v1440, %v1439
        %v1447 = vld [vmem:[%s3] sm:$0xf]
        %v1448 = vld [vmem:[%s3 + $0x4] sm:$0xf]
        %v1449 = vld [vmem:[%s3 + $0x8] sm:$0xf]
        %v1450 = vld [vmem:[%s3 + $0xc] sm:$0xf]
        %v1451 = vld [vmem:[%s3 + $0x10] sm:$0xf]
        %v1452 = vld [vmem:[%s3 + $0x14] sm:$0xf]
        %v1453 = vld [vmem:[%s3 + $0x18] sm:$0xf]
        %v1454 = vld [vmem:[%s3 + $0x1c] sm:$0xf]
        %v1455 = vld [vmem:[%s3 + $0x20] sm:$0xf]
        %v1456 = vld [vmem:[%s3 + $0x24] sm:$0xf]
        %v1457 = vld [vmem:[%s3 + $0x28] sm:$0xf]
        %v1458 = vld [vmem:[%s3 + $0x2c] sm:$0xf]
        %v1459 = vld [vmem:[%s3 + $0x30] sm:$0xf]
        %v1460 = vld [vmem:[%s3 + $0x34] sm:$0xf]
        %v1461 = vld [vmem:[%s3 + $0x38] sm:$0xf]
        %v1462 = vld [vmem:[%s3 + $0x3c] sm:$0xf]
        %v1463 = vld [vmem:[%s3 + $0x40] sm:$0xf]
        %v1464 = vld [vmem:[%s3 + $0x44] sm:$0xf]
        %v1465 = vld [vmem:[%s3 + $0x48] sm:$0xf]
        %v1466 = vld [vmem:[%s3 + $0x4c] sm:$0xf]
        %v1467 = vld [vmem:[%s3 + $0x50] sm:$0xf]
        %v1468 = vld [vmem:[%s3 + $0x54] sm:$0xf]
        %v1469 = vld [vmem:[%s3 + $0x58] sm:$0xf]
        %v1470 = vld [vmem:[%s3 + $0x5c] sm:$0xf]
        %v1471 = vld [vmem:[%s3 + $0x60] sm:$0xf]
        %v1472 = vld [vmem:[%s3 + $0x64] sm:$0xf]
        %v1473 = vld [vmem:[%s3 + $0x68] sm:$0xf]
        %v1474 = vld [vmem:[%s3 + $0x6c] sm:$0xf]
        %v1475 = vld [vmem:[%s3 + $0x70] sm:$0xf]
        %v1476 = vld [vmem:[%s3 + $0x74] sm:$0xf]
        %v1477 = vld [vmem:[%s3 + $0x78] sm:$0xf]
        %v1478 = vld [vmem:[%s3 + $0x7c] sm:$0xf]
        %v1479 = vld [vmem:[%s3 + $0x80] sm:$0xf]
        %v1480 = vld [vmem:[%s3 + $0x84] sm:$0xf]
        %v1481 = vld [vmem:[%s3 + $0x88] sm:$0xf]
        %v1482 = vld [vmem:[%s3 + $0x8c] sm:$0xf]
        %v1483 = vld [vmem:[%s3 + $0x90] sm:$0xf]
        %v1484 = vld [vmem:[%s3 + $0x94] sm:$0xf]
        %v1485 = vld [vmem:[%s3 + $0x98] sm:$0xf]
        %v1486 = vld [vmem:[%s3 + $0x9c] sm:$0xf]
        %v1487 = vld [vmem:[%s3 + $0xa0] sm:$0xf]
        %v1488 = vld [vmem:[%s3 + $0xa4] sm:$0xf]
        %v1489 = vld [vmem:[%s3 + $0xa8] sm:$0xf]
        %v1490 = vld [vmem:[%s3 + $0xac] sm:$0xf]
        %v1491 = vld [vmem:[%s3 + $0xb0] sm:$0xf]
        %v1492 = vld [vmem:[%s3 + $0xb4] sm:$0xf]
        %v1493 = vld [vmem:[%s3 + $0xb8] sm:$0xf]
        %v1494 = vld [vmem:[%s3 + $0xbc] sm:$0xf]
        %s1495 = scalar_lea.vmem [#allocation2], 16
        %v1496 = vld [vmem:[%s1495] sm:$0xff]
        %v1497 = vld [vmem:[%s1495 + $0x10] sm:$0xff]
        %v1498 = vld [vmem:[%s1495 + $0x20] sm:$0xff]
        %v1499 = vld [vmem:[%s1495 + $0x30] sm:$0xff]
        %v1500 = vld [vmem:[%s1495 + $0x1] sm:$0xff]
        %v1501 = vld [vmem:[%s1495 + $0x11] sm:$0xff]
        %v1502 = vld [vmem:[%s1495 + $0x21] sm:$0xff]
        %v1503 = vld [vmem:[%s1495 + $0x31] sm:$0xff]
        %v1504 = vld [vmem:[%s1495 + $0x2] sm:$0xff]
        %v1505 = vld [vmem:[%s1495 + $0x12] sm:$0xff]
        %v1506 = vld [vmem:[%s1495 + $0x22] sm:$0xff]
        %v1507 = vld [vmem:[%s1495 + $0x32] sm:$0xff]
        %v1508 = vpack.c.bf16 %v1497, %v1496
        %v1509 = vpack.c.bf16 %v1501, %v1500
        %v1510 = vpack.c.bf16 %v1505, %v1504
        %v1511 = vpack.c.bf16 %v1499, %v1498
        %v1512 = vpack.c.bf16 %v1503, %v1502
        %v1513 = vpack.c.bf16 %v1507, %v1506
        %s1514 = scalar_lea.vmem %s3, 192
        %v1515 = vld [vmem:[%s1514] sm:$0xf]
        %v1516 = vld [vmem:[%s1514 + $0x4] sm:$0xf]
        %v1517 = vld [vmem:[%s1514 + $0x8] sm:$0xf]
        %v1518 = vld [vmem:[%s1514 + $0xc] sm:$0xf]
        %v1519 = vld [vmem:[%s1514 + $0x10] sm:$0xf]
        %v1520 = vld [vmem:[%s1514 + $0x14] sm:$0xf]
        %v1521 = vld [vmem:[%s1514 + $0x18] sm:$0xf]
        %v1522 = vld [vmem:[%s1514 + $0x1c] sm:$0xf]
        %v1523 = vld [vmem:[%s1514 + $0x20] sm:$0xf]
        %v1524 = vld [vmem:[%s1514 + $0x24] sm:$0xf]
        %v1525 = vld [vmem:[%s1514 + $0x28] sm:$0xf]
        %v1526 = vld [vmem:[%s1514 + $0x2c] sm:$0xf]
        %v1527 = vld [vmem:[%s1514 + $0x30] sm:$0xf]
        %v1528 = vld [vmem:[%s1514 + $0x34] sm:$0xf]
        %v1529 = vld [vmem:[%s1514 + $0x38] sm:$0xf]
        %v1530 = vld [vmem:[%s1514 + $0x3c] sm:$0xf]
        %v1531 = vld [vmem:[%s1514 + $0x40] sm:$0xf]
        %v1532 = vld [vmem:[%s1514 + $0x44] sm:$0xf]
        %v1533 = vld [vmem:[%s1514 + $0x48] sm:$0xf]
        %v1534 = vld [vmem:[%s1514 + $0x4c] sm:$0xf]
        %v1535 = vld [vmem:[%s1514 + $0x50] sm:$0xf]
        %v1536 = vld [vmem:[%s1514 + $0x54] sm:$0xf]
        %v1537 = vld [vmem:[%s1514 + $0x58] sm:$0xf]
        %v1538 = vld [vmem:[%s1514 + $0x5c] sm:$0xf]
        %v1539 = vld [vmem:[%s1514 + $0x60] sm:$0xf]
        %v1540 = vld [vmem:[%s1514 + $0x64] sm:$0xf]
        %v1541 = vld [vmem:[%s1514 + $0x68] sm:$0xf]
        %v1542 = vld [vmem:[%s1514 + $0x6c] sm:$0xf]
        %v1543 = vld [vmem:[%s1514 + $0x70] sm:$0xf]
        %v1544 = vld [vmem:[%s1514 + $0x74] sm:$0xf]
        %v1545 = vld [vmem:[%s1514 + $0x78] sm:$0xf]
        %v1546 = vld [vmem:[%s1514 + $0x7c] sm:$0xf]
        %v1547 = vld [vmem:[%s1514 + $0x80] sm:$0xf]
        %v1548 = vld [vmem:[%s1514 + $0x84] sm:$0xf]
        %v1549 = vld [vmem:[%s1514 + $0x88] sm:$0xf]
        %v1550 = vld [vmem:[%s1514 + $0x8c] sm:$0xf]
        %v1551 = vld [vmem:[%s1514 + $0x90] sm:$0xf]
        %v1552 = vld [vmem:[%s1514 + $0x94] sm:$0xf]
        %v1553 = vld [vmem:[%s1514 + $0x98] sm:$0xf]
        %v1554 = vld [vmem:[%s1514 + $0x9c] sm:$0xf]
        %v1555 = vld [vmem:[%s1514 + $0xa0] sm:$0xf]
        %v1556 = vld [vmem:[%s1514 + $0xa4] sm:$0xf]
        %v1557 = vld [vmem:[%s1514 + $0xa8] sm:$0xf]
        %v1558 = vld [vmem:[%s1514 + $0xac] sm:$0xf]
        %v1559 = vld [vmem:[%s1514 + $0xb0] sm:$0xf]
        %v1560 = vld [vmem:[%s1514 + $0xb4] sm:$0xf]
        %v1561 = vld [vmem:[%s1514 + $0xb8] sm:$0xf]
        %v1562 = vld [vmem:[%s1514 + $0xbc] sm:$0xf]
        %v1611 = vunpack.c.l.b16 %v1515
        %v1612 = vunpack.c.l.b16 %v1516
        %v1613 = vunpack.c.l.b16 %v1517
        %v1614 = vunpack.c.l.b16 %v1518
        %v1615 = vunpack.c.l.b16 %v1519
        %v1616 = vunpack.c.l.b16 %v1520
        %v1617 = vunpack.c.l.b16 %v1521
        %v1618 = vunpack.c.l.b16 %v1522
        %v1619 = vunpack.c.l.b16 %v1523
        %v1620 = vunpack.c.l.b16 %v1524
        %v1621 = vunpack.c.l.b16 %v1525
        %v1622 = vunpack.c.l.b16 %v1526
        %v1623 = vunpack.c.l.b16 %v1527
        %v1624 = vunpack.c.l.b16 %v1528
        %v1625 = vunpack.c.l.b16 %v1529
        %v1626 = vunpack.c.l.b16 %v1530
        %v1627 = vunpack.c.l.b16 %v1531
        %v1628 = vunpack.c.l.b16 %v1532
        %v1629 = vunpack.c.l.b16 %v1533
        %v1630 = vunpack.c.l.b16 %v1534
        %v1631 = vunpack.c.l.b16 %v1535
        %v1632 = vunpack.c.l.b16 %v1536
        %v1633 = vunpack.c.l.b16 %v1537
        %v1634 = vunpack.c.l.b16 %v1538
        %v1635 = vunpack.c.l.b16 %v1539
        %v1636 = vunpack.c.l.b16 %v1540
        %v1637 = vunpack.c.l.b16 %v1541
        %v1638 = vunpack.c.l.b16 %v1542
        %v1639 = vunpack.c.l.b16 %v1543
        %v1640 = vunpack.c.l.b16 %v1544
        %v1641 = vunpack.c.l.b16 %v1545
        %v1642 = vunpack.c.l.b16 %v1546
        %v1643 = vunpack.c.l.b16 %v1547
        %v1644 = vunpack.c.l.b16 %v1548
        %v1645 = vunpack.c.l.b16 %v1549
        %v1646 = vunpack.c.l.b16 %v1550
        %v1647 = vunpack.c.l.b16 %v1551
        %v1648 = vunpack.c.l.b16 %v1552
        %v1649 = vunpack.c.l.b16 %v1553
        %v1650 = vunpack.c.l.b16 %v1554
        %v1651 = vunpack.c.l.b16 %v1555
        %v1652 = vunpack.c.l.b16 %v1556
        %v1653 = vunpack.c.l.b16 %v1557
        %v1654 = vunpack.c.l.b16 %v1558
        %v1655 = vunpack.c.l.b16 %v1559
        %v1656 = vunpack.c.l.b16 %v1560
        %v1657 = vunpack.c.l.b16 %v1561
        %v1658 = vunpack.c.l.b16 %v1562
        %v1659 = vpack.c.b16 %v1612, %v1611
        %v1660 = vpack.c.b16 %v1614, %v1613
        %v1661 = vpack.c.b16 %v1616, %v1615
        %v1662 = vpack.c.b16 %v1618, %v1617
        %v1663 = vpack.c.b16 %v1620, %v1619
        %v1664 = vpack.c.b16 %v1622, %v1621
        %v1665 = vpack.c.b16 %v1624, %v1623
        %v1666 = vpack.c.b16 %v1626, %v1625
        %v1667 = vpack.c.b16 %v1628, %v1627
        %v1668 = vpack.c.b16 %v1630, %v1629
        %v1669 = vpack.c.b16 %v1632, %v1631
        %v1670 = vpack.c.b16 %v1634, %v1633
        %v1671 = vpack.c.b16 %v1636, %v1635
        %v1672 = vpack.c.b16 %v1638, %v1637
        %v1673 = vpack.c.b16 %v1640, %v1639
        %v1674 = vpack.c.b16 %v1642, %v1641
        %v1675 = vpack.c.b16 %v1644, %v1643
        %v1676 = vpack.c.b16 %v1646, %v1645
        %v1677 = vpack.c.b16 %v1648, %v1647
        %v1678 = vpack.c.b16 %v1650, %v1649
        %v1679 = vpack.c.b16 %v1652, %v1651
        %v1680 = vpack.c.b16 %v1654, %v1653
        %v1681 = vpack.c.b16 %v1656, %v1655
        %v1682 = vpack.c.b16 %v1658, %v1657
        %1707 = vmatprep.subr.bf16.mxu0 0
        %1708 = vmatpush1.bf16.msra.mxu0 %v1666
        %1709 = vmatprep.subr.bf16.mxu0 0
        %1710 = vmatpush1.bf16.msra.mxu0 %v1665
        %1711 = vmatprep.subr.bf16.mxu0 0
        %1712 = vmatpush1.bf16.msra.mxu0 %v1664
        %1713 = vmatprep.subr.bf16.mxu0 0
        %1714 = vmatpush1.bf16.msra.mxu0 %v1663
        %1715 = vmatprep.subr.bf16.mxu0 0
        %1716 = vmatpush1.bf16.msra.mxu0 %v1662
        %1717 = vmatprep.subr.bf16.mxu0 0
        %1718 = vmatpush1.bf16.msra.mxu0 %v1661
        %1719 = vmatprep.subr.bf16.mxu0 0
        %1720 = vmatpush1.bf16.msra.mxu0 %v1660
        %1721 = vmatprep.subr.bf16.mxu0 0
        %1722 = vmatpush1.bf16.msra.mxu0 %v1659
        %1723 = vmatprep.subr.bf16.mxu0 0
        %1724 = vmatpush2.bf16.msra.mxu0 %v1674
        %1725 = vmatprep.subr.bf16.mxu0 0
        %1726 = vmatpush2.bf16.msra.mxu0 %v1673
        %1727 = vmatprep.subr.bf16.mxu0 0
        %1728 = vmatpush2.bf16.msra.mxu0 %v1672
        %1729 = vmatprep.subr.bf16.mxu0 0
        %1730 = vmatpush2.bf16.msra.mxu0 %v1671
        %1731 = vmatprep.subr.bf16.mxu0 0
        %1732 = vmatpush2.bf16.msra.mxu0 %v1670
        %1733 = vmatprep.subr.bf16.mxu0 0
        %1734 = vmatpush2.bf16.msra.mxu0 %v1669
        %1735 = vmatprep.subr.bf16.mxu0 0
        %1736 = vmatpush2.bf16.msra.mxu0 %v1668
        %1737 = vmatprep.subr.bf16.mxu0 0
        %1738 = vmatpush2.bf16.msra.mxu0 %v1667
        %1739 = vmatprep.mubr.bf16.mxu0 %v1509
        %1740 = vmatmul.mubr.bf16.gmra.mxu0 %v1508
        %v1741 = vpop.f32.mrf.mxu0
        %v1742 = vadd.f32 0.0, %v1741
        %v1743 = vpop.f32.mrf.mxu0
        %v1744 = vpop.f32.mrf.mxu0
        %v1745 = vadd.f32 0.0, %v1744
        %v1746 = vpop.f32.mrf.mxu0
        %1747 = vmatprep.mubr.bf16.mxu0 %v1512
        %1748 = vmatmul.mubr.bf16.gmra.mxu0 %v1511
        %v1749 = vpop.f32.mrf.mxu0
        %v1750 = vadd.f32 0.0, %v1749
        %v1751 = vpop.f32.mrf.mxu0
        %v1752 = vpop.f32.mrf.mxu0
        %v1753 = vadd.f32 0.0, %v1752
        %v1754 = vpop.f32.mrf.mxu0
        %1755 = vdwg.mxu0
        %1756 = vmatprep.subr.bf16.mxu0 0
        %1757 = vmatpush1.bf16.msra.mxu0 %v1682
        %1758 = vmatprep.subr.bf16.mxu0 0
        %1759 = vmatpush1.bf16.msra.mxu0 %v1681
        %1760 = vmatprep.subr.bf16.mxu0 0
        %1761 = vmatpush1.bf16.msra.mxu0 %v1680
        %1762 = vmatprep.subr.bf16.mxu0 0
        %1763 = vmatpush1.bf16.msra.mxu0 %v1679
        %1764 = vmatprep.subr.bf16.mxu0 0
        %1765 = vmatpush1.bf16.msra.mxu0 %v1678
        %1766 = vmatprep.subr.bf16.mxu0 0
        %1767 = vmatpush1.bf16.msra.mxu0 %v1677
        %1768 = vmatprep.subr.bf16.mxu0 0
        %1769 = vmatpush1.bf16.msra.mxu0 %v1676
        %1770 = vmatprep.subr.bf16.mxu0 0
        %1771 = vmatpush1.bf16.msra.mxu0 %v1675
        %1772 = vmatprep.subr.bf16.mxu0 0
        %1773 = vmatpush2.bf16.msra.mxu0 0
        %1774 = vmatprep.subr.bf16.mxu0 0
        %1775 = vmatpush2.bf16.msra.mxu0 0
        %1776 = vmatprep.subr.bf16.mxu0 0
        %1777 = vmatpush2.bf16.msra.mxu0 0
        %1778 = vmatprep.subr.bf16.mxu0 0
        %1779 = vmatpush2.bf16.msra.mxu0 0
        %1780 = vmatprep.subr.bf16.mxu0 0
        %1781 = vmatpush2.bf16.msra.mxu0 0
        %1782 = vmatprep.subr.bf16.mxu0 0
        %1783 = vmatpush2.bf16.msra.mxu0 0
        %1784 = vmatprep.subr.bf16.mxu0 0
        %1785 = vmatpush2.bf16.msra.mxu0 0
        %1786 = vmatprep.subr.bf16.mxu0 0
        %1787 = vmatpush2.bf16.msra.mxu0 0
        %1788 = vmatprep.mubr.bf16.mxu0 0
        %1789 = vmatmul.mubr.bf16.gmra.mxu0 %v1510
        %v1790 = vpop.f32.mrf.mxu0
        %v1791 = vadd.f32 %v1742, %v1790
        %v1792 = vpop.f32.mrf.mxu0
        %v1793 = vpop.f32.mrf.mxu0
        %v1794 = vadd.f32 %v1745, %v1793
        %v1795 = vpop.f32.mrf.mxu0
        %1796 = vmatprep.mubr.bf16.mxu0 0
        %1797 = vmatmul.mubr.bf16.gmra.mxu0 %v1513
        %v1798 = vpop.f32.mrf.mxu0
        %v1799 = vadd.f32 %v1750, %v1798
        %v1800 = vpop.f32.mrf.mxu0
        %v1801 = vpop.f32.mrf.mxu0
        %v1802 = vadd.f32 %v1753, %v1801
        %v1803 = vpop.f32.mrf.mxu0
        %1804 = vdwg.mxu0
        %v1853 = vunpack.c.l.b16 %v1447
        %v1854 = vunpack.c.l.b16 %v1448
        %v1855 = vunpack.c.l.b16 %v1449
        %v1856 = vunpack.c.l.b16 %v1450
        %v1857 = vunpack.c.l.b16 %v1451
        %v1858 = vunpack.c.l.b16 %v1452
        %v1859 = vunpack.c.l.b16 %v1453
        %v1860 = vunpack.c.l.b16 %v1454
        %v1861 = vunpack.c.l.b16 %v1455
        %v1862 = vunpack.c.l.b16 %v1456
        %v1863 = vunpack.c.l.b16 %v1457
        %v1864 = vunpack.c.l.b16 %v1458
        %v1865 = vunpack.c.l.b16 %v1459
        %v1866 = vunpack.c.l.b16 %v1460
        %v1867 = vunpack.c.l.b16 %v1461
        %v1868 = vunpack.c.l.b16 %v1462
        %v1869 = vunpack.c.l.b16 %v1463
        %v1870 = vunpack.c.l.b16 %v1464
        %v1871 = vunpack.c.l.b16 %v1465
        %v1872 = vunpack.c.l.b16 %v1466
        %v1873 = vunpack.c.l.b16 %v1467
        %v1874 = vunpack.c.l.b16 %v1468
        %v1875 = vunpack.c.l.b16 %v1469
        %v1876 = vunpack.c.l.b16 %v1470
        %v1877 = vunpack.c.l.b16 %v1471
        %v1878 = vunpack.c.l.b16 %v1472
        %v1879 = vunpack.c.l.b16 %v1473
        %v1880 = vunpack.c.l.b16 %v1474
        %v1881 = vunpack.c.l.b16 %v1475
        %v1882 = vunpack.c.l.b16 %v1476
        %v1883 = vunpack.c.l.b16 %v1477
        %v1884 = vunpack.c.l.b16 %v1478
        %v1885 = vunpack.c.l.b16 %v1479
        %v1886 = vunpack.c.l.b16 %v1480
        %v1887 = vunpack.c.l.b16 %v1481
        %v1888 = vunpack.c.l.b16 %v1482
        %v1889 = vunpack.c.l.b16 %v1483
        %v1890 = vunpack.c.l.b16 %v1484
        %v1891 = vunpack.c.l.b16 %v1485
        %v1892 = vunpack.c.l.b16 %v1486
        %v1893 = vunpack.c.l.b16 %v1487
        %v1894 = vunpack.c.l.b16 %v1488
        %v1895 = vunpack.c.l.b16 %v1489
        %v1896 = vunpack.c.l.b16 %v1490
        %v1897 = vunpack.c.l.b16 %v1491
        %v1898 = vunpack.c.l.b16 %v1492
        %v1899 = vunpack.c.l.b16 %v1493
        %v1900 = vunpack.c.l.b16 %v1494
        %v1901 = vpack.c.b16 %v1854, %v1853
        %v1902 = vpack.c.b16 %v1856, %v1855
        %v1903 = vpack.c.b16 %v1858, %v1857
        %v1904 = vpack.c.b16 %v1860, %v1859
        %v1905 = vpack.c.b16 %v1862, %v1861
        %v1906 = vpack.c.b16 %v1864, %v1863
        %v1907 = vpack.c.b16 %v1866, %v1865
        %v1908 = vpack.c.b16 %v1868, %v1867
        %v1909 = vpack.c.b16 %v1870, %v1869
        %v1910 = vpack.c.b16 %v1872, %v1871
        %v1911 = vpack.c.b16 %v1874, %v1873
        %v1912 = vpack.c.b16 %v1876, %v1875
        %v1913 = vpack.c.b16 %v1878, %v1877
        %v1914 = vpack.c.b16 %v1880, %v1879
        %v1915 = vpack.c.b16 %v1882, %v1881
        %v1916 = vpack.c.b16 %v1884, %v1883
        %v1917 = vpack.c.b16 %v1886, %v1885
        %v1918 = vpack.c.b16 %v1888, %v1887
        %v1919 = vpack.c.b16 %v1890, %v1889
        %v1920 = vpack.c.b16 %v1892, %v1891
        %v1921 = vpack.c.b16 %v1894, %v1893
        %v1922 = vpack.c.b16 %v1896, %v1895
        %v1923 = vpack.c.b16 %v1898, %v1897
        %v1924 = vpack.c.b16 %v1900, %v1899
        %1949 = vmatprep.subr.bf16.mxu0 0
        %1950 = vmatpush1.bf16.msra.mxu0 %v1908
        %1951 = vmatprep.subr.bf16.mxu0 0
        %1952 = vmatpush1.bf16.msra.mxu0 %v1907
        %1953 = vmatprep.subr.bf16.mxu0 0
        %1954 = vmatpush1.bf16.msra.mxu0 %v1906
        %1955 = vmatprep.subr.bf16.mxu0 0
        %1956 = vmatpush1.bf16.msra.mxu0 %v1905
        %1957 = vmatprep.subr.bf16.mxu0 0
        %1958 = vmatpush1.bf16.msra.mxu0 %v1904
        %1959 = vmatprep.subr.bf16.mxu0 0
        %1960 = vmatpush1.bf16.msra.mxu0 %v1903
        %1961 = vmatprep.subr.bf16.mxu0 0
        %1962 = vmatpush1.bf16.msra.mxu0 %v1902
        %1963 = vmatprep.subr.bf16.mxu0 0
        %1964 = vmatpush1.bf16.msra.mxu0 %v1901
        %1965 = vmatprep.subr.bf16.mxu0 0
        %1966 = vmatpush2.bf16.msra.mxu0 %v1916
        %1967 = vmatprep.subr.bf16.mxu0 0
        %1968 = vmatpush2.bf16.msra.mxu0 %v1915
        %1969 = vmatprep.subr.bf16.mxu0 0
        %1970 = vmatpush2.bf16.msra.mxu0 %v1914
        %1971 = vmatprep.subr.bf16.mxu0 0
        %1972 = vmatpush2.bf16.msra.mxu0 %v1913
        %1973 = vmatprep.subr.bf16.mxu0 0
        %1974 = vmatpush2.bf16.msra.mxu0 %v1912
        %1975 = vmatprep.subr.bf16.mxu0 0
        %1976 = vmatpush2.bf16.msra.mxu0 %v1911
        %1977 = vmatprep.subr.bf16.mxu0 0
        %1978 = vmatpush2.bf16.msra.mxu0 %v1910
        %1979 = vmatprep.subr.bf16.mxu0 0
        %1980 = vmatpush2.bf16.msra.mxu0 %v1909
        %1981 = vmatprep.mubr.bf16.mxu0 %v1442
        %1982 = vmatmul.mubr.bf16.gmra.mxu0 %v1441
        %v1983 = vpop.f32.mrf.mxu0
        %v1984 = vadd.f32 %v1791, %v1983
        %v1985 = vpop.f32.mrf.mxu0
        %v1986 = vpop.f32.mrf.mxu0
        %v1987 = vadd.f32 %v1794, %v1986
        %v1988 = vpop.f32.mrf.mxu0
        %1989 = vmatprep.mubr.bf16.mxu0 %v1445
        %1990 = vmatmul.mubr.bf16.gmra.mxu0 %v1444
        %v1991 = vpop.f32.mrf.mxu0
        %v1992 = vadd.f32 %v1799, %v1991
        %v1993 = vpop.f32.mrf.mxu0
        %v1994 = vpop.f32.mrf.mxu0
        %v1995 = vadd.f32 %v1802, %v1994
        %v1996 = vpop.f32.mrf.mxu0
        %1997 = vdwg.mxu0
        %1998 = vmatprep.subr.bf16.mxu0 0
        %1999 = vmatpush1.bf16.msra.mxu0 %v1924
        %2000 = vmatprep.subr.bf16.mxu0 0
        %2001 = vmatpush1.bf16.msra.mxu0 %v1923
        %2002 = vmatprep.subr.bf16.mxu0 0
        %2003 = vmatpush1.bf16.msra.mxu0 %v1922
        %2004 = vmatprep.subr.bf16.mxu0 0
        %2005 = vmatpush1.bf16.msra.mxu0 %v1921
        %2006 = vmatprep.subr.bf16.mxu0 0
        %2007 = vmatpush1.bf16.msra.mxu0 %v1920
        %2008 = vmatprep.subr.bf16.mxu0 0
        %2009 = vmatpush1.bf16.msra.mxu0 %v1919
        %2010 = vmatprep.subr.bf16.mxu0 0
        %2011 = vmatpush1.bf16.msra.mxu0 %v1918
        %2012 = vmatprep.subr.bf16.mxu0 0
        %2013 = vmatpush1.bf16.msra.mxu0 %v1917
        %2014 = vmatprep.subr.bf16.mxu0 0
        %2015 = vmatpush2.bf16.msra.mxu0 0
        %2016 = vmatprep.subr.bf16.mxu0 0
        %2017 = vmatpush2.bf16.msra.mxu0 0
        %2018 = vmatprep.subr.bf16.mxu0 0
        %2019 = vmatpush2.bf16.msra.mxu0 0
        %2020 = vmatprep.subr.bf16.mxu0 0
        %2021 = vmatpush2.bf16.msra.mxu0 0
        %2022 = vmatprep.subr.bf16.mxu0 0
        %2023 = vmatpush2.bf16.msra.mxu0 0
        %2024 = vmatprep.subr.bf16.mxu0 0
        %2025 = vmatpush2.bf16.msra.mxu0 0
        %2026 = vmatprep.subr.bf16.mxu0 0
        %2027 = vmatpush2.bf16.msra.mxu0 0
        %2028 = vmatprep.subr.bf16.mxu0 0
        %2029 = vmatpush2.bf16.msra.mxu0 0
        %2030 = vmatprep.mubr.bf16.mxu0 0
        %2031 = vmatmul.mubr.bf16.gmra.mxu0 %v1443
        %v2032 = vpop.f32.mrf.mxu0
        %v2033 = vadd.f32 %v1984, %v2032
        %v2034 = vpop.f32.mrf.mxu0
        %v2035 = vpop.f32.mrf.mxu0
        %v2036 = vadd.f32 %v1987, %v2035
        %v2037 = vpop.f32.mrf.mxu0
        %2038 = vmatprep.mubr.bf16.mxu0 0
        %2039 = vmatmul.mubr.bf16.gmra.mxu0 %v1446
        %v2040 = vpop.f32.mrf.mxu0
        %v2041 = vadd.f32 %v1992, %v2040
        %v2042 = vpop.f32.mrf.mxu0
        %v2043 = vpop.f32.mrf.mxu0
        %v2044 = vadd.f32 %v1995, %v2043
        %v2045 = vpop.f32.mrf.mxu0
        %2046 = vdwg.mxu0
        %s2047 = scalar_lea.vmem [#allocation2], 32
        %v2048 = vld [vmem:[%s2047] sm:$0xff]
        %v2049 = vld [vmem:[%s2047 + $0x10] sm:$0xff]
        %v2050 = vld [vmem:[%s2047 + $0x20] sm:$0xff]
        %v2051 = vld [vmem:[%s2047 + $0x30] sm:$0xff]
        %v2052 = vld [vmem:[%s2047 + $0x1] sm:$0xff]
        %v2053 = vld [vmem:[%s2047 + $0x11] sm:$0xff]
        %v2054 = vld [vmem:[%s2047 + $0x21] sm:$0xff]
        %v2055 = vld [vmem:[%s2047 + $0x31] sm:$0xff]
        %v2056 = vld [vmem:[%s2047 + $0x2] sm:$0xff]
        %v2057 = vld [vmem:[%s2047 + $0x12] sm:$0xff]
        %v2058 = vld [vmem:[%s2047 + $0x22] sm:$0xff]
        %v2059 = vld [vmem:[%s2047 + $0x32] sm:$0xff]
        %v2060 = vpack.c.bf16 %v2049, %v2048
        %v2061 = vpack.c.bf16 %v2053, %v2052
        %v2062 = vpack.c.bf16 %v2057, %v2056
        %v2063 = vpack.c.bf16 %v2051, %v2050
        %v2064 = vpack.c.bf16 %v2055, %v2054
        %v2065 = vpack.c.bf16 %v2059, %v2058
        %s2066 = scalar_lea.vmem %s3, 384
        %v2067 = vld [vmem:[%s2066] sm:$0xf]
        %v2068 = vld [vmem:[%s2066 + $0x4] sm:$0xf]
        %v2069 = vld [vmem:[%s2066 + $0x8] sm:$0xf]
        %v2070 = vld [vmem:[%s2066 + $0xc] sm:$0xf]
        %v2071 = vld [vmem:[%s2066 + $0x10] sm:$0xf]
        %v2072 = vld [vmem:[%s2066 + $0x14] sm:$0xf]
        %v2073 = vld [vmem:[%s2066 + $0x18] sm:$0xf]
        %v2074 = vld [vmem:[%s2066 + $0x1c] sm:$0xf]
        %v2075 = vld [vmem:[%s2066 + $0x20] sm:$0xf]
        %v2076 = vld [vmem:[%s2066 + $0x24] sm:$0xf]
        %v2077 = vld [vmem:[%s2066 + $0x28] sm:$0xf]
        %v2078 = vld [vmem:[%s2066 + $0x2c] sm:$0xf]
        %v2079 = vld [vmem:[%s2066 + $0x30] sm:$0xf]
        %v2080 = vld [vmem:[%s2066 + $0x34] sm:$0xf]
        %v2081 = vld [vmem:[%s2066 + $0x38] sm:$0xf]
        %v2082 = vld [vmem:[%s2066 + $0x3c] sm:$0xf]
        %v2083 = vld [vmem:[%s2066 + $0x40] sm:$0xf]
        %v2084 = vld [vmem:[%s2066 + $0x44] sm:$0xf]
        %v2085 = vld [vmem:[%s2066 + $0x48] sm:$0xf]
        %v2086 = vld [vmem:[%s2066 + $0x4c] sm:$0xf]
        %v2087 = vld [vmem:[%s2066 + $0x50] sm:$0xf]
        %v2088 = vld [vmem:[%s2066 + $0x54] sm:$0xf]
        %v2089 = vld [vmem:[%s2066 + $0x58] sm:$0xf]
        %v2090 = vld [vmem:[%s2066 + $0x5c] sm:$0xf]
        %v2091 = vld [vmem:[%s2066 + $0x60] sm:$0xf]
        %v2092 = vld [vmem:[%s2066 + $0x64] sm:$0xf]
        %v2093 = vld [vmem:[%s2066 + $0x68] sm:$0xf]
        %v2094 = vld [vmem:[%s2066 + $0x6c] sm:$0xf]
        %v2095 = vld [vmem:[%s2066 + $0x70] sm:$0xf]
        %v2096 = vld [vmem:[%s2066 + $0x74] sm:$0xf]
        %v2097 = vld [vmem:[%s2066 + $0x78] sm:$0xf]
        %v2098 = vld [vmem:[%s2066 + $0x7c] sm:$0xf]
        %v2099 = vld [vmem:[%s2066 + $0x80] sm:$0xf]
        %v2100 = vld [vmem:[%s2066 + $0x84] sm:$0xf]
        %v2101 = vld [vmem:[%s2066 + $0x88] sm:$0xf]
        %v2102 = vld [vmem:[%s2066 + $0x8c] sm:$0xf]
        %v2103 = vld [vmem:[%s2066 + $0x90] sm:$0xf]
        %v2104 = vld [vmem:[%s2066 + $0x94] sm:$0xf]
        %v2105 = vld [vmem:[%s2066 + $0x98] sm:$0xf]
        %v2106 = vld [vmem:[%s2066 + $0x9c] sm:$0xf]
        %v2107 = vld [vmem:[%s2066 + $0xa0] sm:$0xf]
        %v2108 = vld [vmem:[%s2066 + $0xa4] sm:$0xf]
        %v2109 = vld [vmem:[%s2066 + $0xa8] sm:$0xf]
        %v2110 = vld [vmem:[%s2066 + $0xac] sm:$0xf]
        %v2111 = vld [vmem:[%s2066 + $0xb0] sm:$0xf]
        %v2112 = vld [vmem:[%s2066 + $0xb4] sm:$0xf]
        %v2113 = vld [vmem:[%s2066 + $0xb8] sm:$0xf]
        %v2114 = vld [vmem:[%s2066 + $0xbc] sm:$0xf]
        %v2163 = vunpack.c.l.b16 %v2067
        %v2164 = vunpack.c.l.b16 %v2068
        %v2165 = vunpack.c.l.b16 %v2069
        %v2166 = vunpack.c.l.b16 %v2070
        %v2167 = vunpack.c.l.b16 %v2071
        %v2168 = vunpack.c.l.b16 %v2072
        %v2169 = vunpack.c.l.b16 %v2073
        %v2170 = vunpack.c.l.b16 %v2074
        %v2171 = vunpack.c.l.b16 %v2075
        %v2172 = vunpack.c.l.b16 %v2076
        %v2173 = vunpack.c.l.b16 %v2077
        %v2174 = vunpack.c.l.b16 %v2078
        %v2175 = vunpack.c.l.b16 %v2079
        %v2176 = vunpack.c.l.b16 %v2080
        %v2177 = vunpack.c.l.b16 %v2081
        %v2178 = vunpack.c.l.b16 %v2082
        %v2179 = vunpack.c.l.b16 %v2083
        %v2180 = vunpack.c.l.b16 %v2084
        %v2181 = vunpack.c.l.b16 %v2085
        %v2182 = vunpack.c.l.b16 %v2086
        %v2183 = vunpack.c.l.b16 %v2087
        %v2184 = vunpack.c.l.b16 %v2088
        %v2185 = vunpack.c.l.b16 %v2089
        %v2186 = vunpack.c.l.b16 %v2090
        %v2187 = vunpack.c.l.b16 %v2091
        %v2188 = vunpack.c.l.b16 %v2092
        %v2189 = vunpack.c.l.b16 %v2093
        %v2190 = vunpack.c.l.b16 %v2094
        %v2191 = vunpack.c.l.b16 %v2095
        %v2192 = vunpack.c.l.b16 %v2096
        %v2193 = vunpack.c.l.b16 %v2097
        %v2194 = vunpack.c.l.b16 %v2098
        %v2195 = vunpack.c.l.b16 %v2099
        %v2196 = vunpack.c.l.b16 %v2100
        %v2197 = vunpack.c.l.b16 %v2101
        %v2198 = vunpack.c.l.b16 %v2102
        %v2199 = vunpack.c.l.b16 %v2103
        %v2200 = vunpack.c.l.b16 %v2104
        %v2201 = vunpack.c.l.b16 %v2105
        %v2202 = vunpack.c.l.b16 %v2106
        %v2203 = vunpack.c.l.b16 %v2107
        %v2204 = vunpack.c.l.b16 %v2108
        %v2205 = vunpack.c.l.b16 %v2109
        %v2206 = vunpack.c.l.b16 %v2110
        %v2207 = vunpack.c.l.b16 %v2111
        %v2208 = vunpack.c.l.b16 %v2112
        %v2209 = vunpack.c.l.b16 %v2113
        %v2210 = vunpack.c.l.b16 %v2114
        %v2211 = vpack.c.b16 %v2164, %v2163
        %v2212 = vpack.c.b16 %v2166, %v2165
        %v2213 = vpack.c.b16 %v2168, %v2167
        %v2214 = vpack.c.b16 %v2170, %v2169
        %v2215 = vpack.c.b16 %v2172, %v2171
        %v2216 = vpack.c.b16 %v2174, %v2173
        %v2217 = vpack.c.b16 %v2176, %v2175
        %v2218 = vpack.c.b16 %v2178, %v2177
        %v2219 = vpack.c.b16 %v2180, %v2179
        %v2220 = vpack.c.b16 %v2182, %v2181
        %v2221 = vpack.c.b16 %v2184, %v2183
        %v2222 = vpack.c.b16 %v2186, %v2185
        %v2223 = vpack.c.b16 %v2188, %v2187
        %v2224 = vpack.c.b16 %v2190, %v2189
        %v2225 = vpack.c.b16 %v2192, %v2191
        %v2226 = vpack.c.b16 %v2194, %v2193
        %v2227 = vpack.c.b16 %v2196, %v2195
        %v2228 = vpack.c.b16 %v2198, %v2197
        %v2229 = vpack.c.b16 %v2200, %v2199
        %v2230 = vpack.c.b16 %v2202, %v2201
        %v2231 = vpack.c.b16 %v2204, %v2203
        %v2232 = vpack.c.b16 %v2206, %v2205
        %v2233 = vpack.c.b16 %v2208, %v2207
        %v2234 = vpack.c.b16 %v2210, %v2209
        %2259 = vmatprep.subr.bf16.mxu0 0
        %2260 = vmatpush1.bf16.msra.mxu0 %v2218
        %2261 = vmatprep.subr.bf16.mxu0 0
        %2262 = vmatpush1.bf16.msra.mxu0 %v2217
        %2263 = vmatprep.subr.bf16.mxu0 0
        %2264 = vmatpush1.bf16.msra.mxu0 %v2216
        %2265 = vmatprep.subr.bf16.mxu0 0
        %2266 = vmatpush1.bf16.msra.mxu0 %v2215
        %2267 = vmatprep.subr.bf16.mxu0 0
        %2268 = vmatpush1.bf16.msra.mxu0 %v2214
        %2269 = vmatprep.subr.bf16.mxu0 0
        %2270 = vmatpush1.bf16.msra.mxu0 %v2213
        %2271 = vmatprep.subr.bf16.mxu0 0
        %2272 = vmatpush1.bf16.msra.mxu0 %v2212
        %2273 = vmatprep.subr.bf16.mxu0 0
        %2274 = vmatpush1.bf16.msra.mxu0 %v2211
        %2275 = vmatprep.subr.bf16.mxu0 0
        %2276 = vmatpush2.bf16.msra.mxu0 %v2226
        %2277 = vmatprep.subr.bf16.mxu0 0
        %2278 = vmatpush2.bf16.msra.mxu0 %v2225
        %2279 = vmatprep.subr.bf16.mxu0 0
        %2280 = vmatpush2.bf16.msra.mxu0 %v2224
        %2281 = vmatprep.subr.bf16.mxu0 0
        %2282 = vmatpush2.bf16.msra.mxu0 %v2223
        %2283 = vmatprep.subr.bf16.mxu0 0
        %2284 = vmatpush2.bf16.msra.mxu0 %v2222
        %2285 = vmatprep.subr.bf16.mxu0 0
        %2286 = vmatpush2.bf16.msra.mxu0 %v2221
        %2287 = vmatprep.subr.bf16.mxu0 0
        %2288 = vmatpush2.bf16.msra.mxu0 %v2220
        %2289 = vmatprep.subr.bf16.mxu0 0
        %2290 = vmatpush2.bf16.msra.mxu0 %v2219
        %2291 = vmatprep.mubr.bf16.mxu0 %v2061
        %2292 = vmatmul.mubr.bf16.gmra.mxu0 %v2060
        %v2293 = vpop.f32.mrf.mxu0
        %v2294 = vadd.f32 0.0, %v2293
        %v2295 = vpop.f32.mrf.mxu0
        %v2296 = vpop.f32.mrf.mxu0
        %v2297 = vadd.f32 0.0, %v2296
        %v2298 = vpop.f32.mrf.mxu0
        %2299 = vmatprep.mubr.bf16.mxu0 %v2064
        %2300 = vmatmul.mubr.bf16.gmra.mxu0 %v2063
        %v2301 = vpop.f32.mrf.mxu0
        %v2302 = vadd.f32 0.0, %v2301
        %v2303 = vpop.f32.mrf.mxu0
        %v2304 = vpop.f32.mrf.mxu0
        %v2305 = vadd.f32 0.0, %v2304
        %v2306 = vpop.f32.mrf.mxu0
        %2307 = vdwg.mxu0
        %2308 = vmatprep.subr.bf16.mxu0 0
        %2309 = vmatpush1.bf16.msra.mxu0 %v2234
        %2310 = vmatprep.subr.bf16.mxu0 0
        %2311 = vmatpush1.bf16.msra.mxu0 %v2233
        %2312 = vmatprep.subr.bf16.mxu0 0
        %2313 = vmatpush1.bf16.msra.mxu0 %v2232
        %2314 = vmatprep.subr.bf16.mxu0 0
        %2315 = vmatpush1.bf16.msra.mxu0 %v2231
        %2316 = vmatprep.subr.bf16.mxu0 0
        %2317 = vmatpush1.bf16.msra.mxu0 %v2230
        %2318 = vmatprep.subr.bf16.mxu0 0
        %2319 = vmatpush1.bf16.msra.mxu0 %v2229
        %2320 = vmatprep.subr.bf16.mxu0 0
        %2321 = vmatpush1.bf16.msra.mxu0 %v2228
        %2322 = vmatprep.subr.bf16.mxu0 0
        %2323 = vmatpush1.bf16.msra.mxu0 %v2227
        %2324 = vmatprep.subr.bf16.mxu0 0
        %2325 = vmatpush2.bf16.msra.mxu0 0
        %2326 = vmatprep.subr.bf16.mxu0 0
        %2327 = vmatpush2.bf16.msra.mxu0 0
        %2328 = vmatprep.subr.bf16.mxu0 0
        %2329 = vmatpush2.bf16.msra.mxu0 0
        %2330 = vmatprep.subr.bf16.mxu0 0
        %2331 = vmatpush2.bf16.msra.mxu0 0
        %2332 = vmatprep.subr.bf16.mxu0 0
        %2333 = vmatpush2.bf16.msra.mxu0 0
        %2334 = vmatprep.subr.bf16.mxu0 0
        %2335 = vmatpush2.bf16.msra.mxu0 0
        %2336 = vmatprep.subr.bf16.mxu0 0
        %2337 = vmatpush2.bf16.msra.mxu0 0
        %2338 = vmatprep.subr.bf16.mxu0 0
        %2339 = vmatpush2.bf16.msra.mxu0 0
        %2340 = vmatprep.mubr.bf16.mxu0 0
        %2341 = vmatmul.mubr.bf16.gmra.mxu0 %v2062
        %v2342 = vpop.f32.mrf.mxu0
        %v2343 = vadd.f32 %v2294, %v2342
        %v2344 = vpop.f32.mrf.mxu0
        %v2345 = vpop.f32.mrf.mxu0
        %v2346 = vadd.f32 %v2297, %v2345
        %v2347 = vpop.f32.mrf.mxu0
        %2348 = vmatprep.mubr.bf16.mxu0 0
        %2349 = vmatmul.mubr.bf16.gmra.mxu0 %v2065
        %v2350 = vpop.f32.mrf.mxu0
        %v2351 = vadd.f32 %v2302, %v2350
        %v2352 = vpop.f32.mrf.mxu0
        %v2353 = vpop.f32.mrf.mxu0
        %v2354 = vadd.f32 %v2305, %v2353
        %v2355 = vpop.f32.mrf.mxu0
        %2356 = vdwg.mxu0
        %v2357 = vadd.f32 %v2033, %v2343
        %v2358 = vadd.f32 %v2036, %v2346
        %v2359 = vadd.f32 %v2041, %v2351
        %v2360 = vadd.f32 %v2044, %v2354
        %v2361 = vld [vmem:[%s4] sm:$0x1]
        %v2363 = vlaneseq
        %v2364 = vshrl.u32 %v2363, 7
        %v2365 = vsub.s32 0, %v2364
        %v2366 = vrot.slane %v2361, %v2365
        %v2368 = vadd.f32 %v2357, %v2366
        %v2369 = vadd.f32 %v2358, %v2366
        %v2370 = vadd.f32 %v2359, %v2366
        %v2371 = vadd.f32 %v2360, %v2366
        %s2372 = sadd.s32 %s293, 3
        %s2373 = smul.u32 %s2372, 24
        %s2374 = scalar_lea.vmem %s290, %s2373
        %s2375 = scalar_lea.vmem %s2374, 1
        %v2376 = vld [vmem:[%s2375] ss:$2 sm:$0xff]
        %s2377 = scalar_lea.vmem %s2374, 49
        %v2378 = vld [vmem:[%s2377] ss:$2 sm:$0xff]
        %s2379 = scalar_lea.vmem %s2374, 97
        %v2380 = vld [vmem:[%s2379] ss:$2 sm:$0xff]
        %s2381 = scalar_lea.vmem %s2374, 145
        %v2382 = vld [vmem:[%s2381] ss:$2 sm:$0xff]
        %v2383 = vpack.c.bf16 %v2378, %v2376
        %v2384 = vpack.c.bf16 %v2382, %v2380
        %v2385 = vld [vmem:[%s5] sm:$0xf]
        %v2386 = vld [vmem:[%s5 + $0x4] sm:$0xf]
        %v2387 = vld [vmem:[%s5 + $0x8] sm:$0xf]
        %v2388 = vld [vmem:[%s5 + $0xc] sm:$0xf]
        %v2389 = vld [vmem:[%s5 + $0x10] sm:$0xf]
        %v2390 = vld [vmem:[%s5 + $0x14] sm:$0xf]
        %v2391 = vld [vmem:[%s5 + $0x18] sm:$0xf]
        %v2392 = vld [vmem:[%s5 + $0x1c] sm:$0xf]
        %v2393 = vld [vmem:[%s5 + $0x20] sm:$0xf]
        %v2394 = vld [vmem:[%s5 + $0x24] sm:$0xf]
        %v2395 = vld [vmem:[%s5 + $0x28] sm:$0xf]
        %v2396 = vld [vmem:[%s5 + $0x2c] sm:$0xf]
        %v2397 = vld [vmem:[%s5 + $0x30] sm:$0xf]
        %v2398 = vld [vmem:[%s5 + $0x34] sm:$0xf]
        %v2399 = vld [vmem:[%s5 + $0x38] sm:$0xf]
        %v2400 = vld [vmem:[%s5 + $0x3c] sm:$0xf]
        %v2401 = vld [vmem:[%s6] sm:$0x1]
        %v2403 = vlaneseq
        %v2404 = vshrl.u32 %v2403, 7
        %v2405 = vsub.s32 0, %v2404
        %v2406 = vrot.slane %v2401, %v2405
        %v2424 = vunpack.c.l.b16 %v2385
        %v2425 = vunpack.c.l.b16 %v2386
        %v2426 = vunpack.c.l.b16 %v2387
        %v2427 = vunpack.c.l.b16 %v2388
        %v2428 = vunpack.c.l.b16 %v2389
        %v2429 = vunpack.c.l.b16 %v2390
        %v2430 = vunpack.c.l.b16 %v2391
        %v2431 = vunpack.c.l.b16 %v2392
        %v2432 = vunpack.c.l.b16 %v2393
        %v2433 = vunpack.c.l.b16 %v2394
        %v2434 = vunpack.c.l.b16 %v2395
        %v2435 = vunpack.c.l.b16 %v2396
        %v2436 = vunpack.c.l.b16 %v2397
        %v2437 = vunpack.c.l.b16 %v2398
        %v2438 = vunpack.c.l.b16 %v2399
        %v2439 = vunpack.c.l.b16 %v2400
        %v2440 = vpack.c.b16 %v2425, %v2424
        %v2441 = vpack.c.b16 %v2427, %v2426
        %v2442 = vpack.c.b16 %v2429, %v2428
        %v2443 = vpack.c.b16 %v2431, %v2430
        %v2444 = vpack.c.b16 %v2433, %v2432
        %v2445 = vpack.c.b16 %v2435, %v2434
        %v2446 = vpack.c.b16 %v2437, %v2436
        %v2447 = vpack.c.b16 %v2439, %v2438
        %2456 = vmatprep.subr.bf16.mxu0 0
        %2457 = vmatpush1.bf16.msra.mxu0 %v2447
        %2458 = vmatprep.subr.bf16.mxu0 0
        %2459 = vmatpush1.bf16.msra.mxu0 %v2446
        %2460 = vmatprep.subr.bf16.mxu0 0
        %2461 = vmatpush1.bf16.msra.mxu0 %v2445
        %2462 = vmatprep.subr.bf16.mxu0 0
        %2463 = vmatpush1.bf16.msra.mxu0 %v2444
        %2464 = vmatprep.subr.bf16.mxu0 0
        %2465 = vmatpush1.bf16.msra.mxu0 %v2443
        %2466 = vmatprep.subr.bf16.mxu0 0
        %2467 = vmatpush1.bf16.msra.mxu0 %v2442
        %2468 = vmatprep.subr.bf16.mxu0 0
        %2469 = vmatpush1.bf16.msra.mxu0 %v2441
        %2470 = vmatprep.subr.bf16.mxu0 0
        %2471 = vmatpush1.bf16.msra.mxu0 %v2440
        %2472 = vmatprep.subr.bf16.mxu0 0
        %2473 = vmatpush2.bf16.msra.mxu0 0
        %2474 = vmatprep.subr.bf16.mxu0 0
        %2475 = vmatpush2.bf16.msra.mxu0 0
        %2476 = vmatprep.subr.bf16.mxu0 0
        %2477 = vmatpush2.bf16.msra.mxu0 0
        %2478 = vmatprep.subr.bf16.mxu0 0
        %2479 = vmatpush2.bf16.msra.mxu0 0
        %2480 = vmatprep.subr.bf16.mxu0 0
        %2481 = vmatpush2.bf16.msra.mxu0 0
        %2482 = vmatprep.subr.bf16.mxu0 0
        %2483 = vmatpush2.bf16.msra.mxu0 0
        %2484 = vmatprep.subr.bf16.mxu0 0
        %2485 = vmatpush2.bf16.msra.mxu0 0
        %2486 = vmatprep.subr.bf16.mxu0 0
        %2487 = vmatpush2.bf16.msra.mxu0 0
        %2488 = vmatprep.mubr.bf16.mxu0 0
        %2489 = vmatmul.mubr.bf16.gmra.mxu0 %v2383
        %v2490 = vpop.f32.mrf.mxu0
        %v2491 = vadd.f32 %v2406, %v2490
        %v2492 = vpop.f32.mrf.mxu0
        %v2493 = vpop.f32.mrf.mxu0
        %v2494 = vadd.f32 %v2406, %v2493
        %v2495 = vpop.f32.mrf.mxu0
        %2496 = vmatprep.mubr.bf16.mxu0 0
        %2497 = vmatmul.mubr.bf16.gmra.mxu0 %v2384
        %v2498 = vpop.f32.mrf.mxu0
        %v2499 = vadd.f32 %v2406, %v2498
        %v2500 = vpop.f32.mrf.mxu0
        %v2501 = vpop.f32.mrf.mxu0
        %v2502 = vadd.f32 %v2406, %v2501
        %v2503 = vpop.f32.mrf.mxu0
        %2504 = vdwg.mxu0
        %v2505 = vadd.f32 %v2368, %v2491
        %v2506 = vadd.f32 %v2369, %v2494
        %v2507 = vadd.f32 %v2370, %v2499
        %v2508 = vadd.f32 %v2371, %v2502
        %v2509 = vmax.f32 %v2505, 0.0
        %v2510 = vmax.f32 %v2506, 0.0
        %v2511 = vmax.f32 %v2507, 0.0
        %v2512 = vmax.f32 %v2508, 0.0
        %2513 = vst [vmem:[%s285] sm:$0xff] %v2509
        %2514 = vst [vmem:[%s285 + $0x8] sm:$0xff] %v2510
        %2515 = vst [vmem:[%s285 + $0x10] sm:$0xff] %v2511
        %2516 = vst [vmem:[%s285 + $0x18] sm:$0xff] %v2512
        %s2517 = sand.u32 %s195, 1
        %s2518 = scalar_lea.sflag [#allocation4], %s2517
        %s2519 = sand.u32 %s195, 1
        %s2520 = smul.addr %s2519, 32
        %s2521 = scalar_lea.vmem [#allocation3], %s2520
        // Predicated region
        $region49: #{tpu_custom_call.1} parent=47 // pred_check
          %p2522 = pneg %p205
        $region50: #{tpu_custom_call.1} parent=47 // pred_check_branch
          %2524 = sbr.rel (%p2522) target = $region52
        $region51: #{tpu_custom_call.1} parent=47 // pred_region
          %s2525 = smul.u32 4, %s26
          %s2527 = ssub.s32 512, 512
          %2528 = vsyncadd %s2518, %s2527
          %s2529 = smul.addr %s25, 8
          %s2530 = sadd.s32 %s2525, %s2529
          %s2531 = smul.addr %s2530, 128
          %s2532 = scalar_lea.hbm %s7, %s2531
          %s2533 = sshll.u32 %s2521, 4
          %s2534 = int_to_ptr.vmem [resolvable:$true] %s2533
          %2539 = dma.vmem_to_hbm [thread:$0]  %s2534, 512, %s2532, %s2518, 128, 128, 8
        $region52: #{tpu_custom_call.1} parent=47 // pred_fallthru
          _
      $region48: #{tpu_custom_call.1} parent=5 // pred_fallthru
        _
      %p2540 = scmp.le.s32.totalorder 2, %s16
      // Predicated region
      $region53: #{tpu_custom_call.1} parent=5 // pred_check
        %p2541 = pneg %p2540
      $region54: #{tpu_custom_call.1} parent=5 // pred_check_branch
        %2543 = sbr.rel (%p2541) target = $region56
      $region55: #{tpu_custom_call.1} parent=5 // pred_region
        %s2544 = ssub.s32 %s16, 2
        // Predicated region
        $region57: #{tpu_custom_call.1} parent=55 // pred_check
          %p2545 = pneg %p211
        $region58: #{tpu_custom_call.1} parent=55 // pred_check_branch
          %2547 = sbr.rel (%p2545) target = $region60
        $region59: #{tpu_custom_call.1} parent=55 // pred_region
          %s2548 = sand.u32 %s196, 1
          %s2549 = scalar_lea.sflag [#allocation4], %s2548
          %s2550 = sand.u32 %s196, 1
          %s2551 = smul.addr %s2550, 32
          %s2552 = scalar_lea.vmem [#allocation3], %s2551
          %2553 = dma.done %s2549, 512
        $region60: #{tpu_custom_call.1} parent=55 // pred_fallthru
          _
      $region56: #{tpu_custom_call.1} parent=5 // pred_fallthru
        _
    $region6: #{tpu_custom_call.1} parent=1 // loop_footer
      %s20 = sadd.s32 1, %s16
    $region7: #{tpu_custom_call.1} parent=1 // loop_footer_branch
      %15 = sbr.rel target = $region3
    $region8: #{tpu_custom_call.1} parent=1 // loop_exit
      _
    %2554 = vsyncpa [#allocation4], 1
    %s2555 = scalar_lea.sflag [#allocation4], 1
    %2556 = vsyncpa %s2555, 1

</llo_original>
